<compile_context>
chip_gen: v7x
topology: tpu7x:2x2x1
jax: 0.10.0
libtpu: 0.0.40
codegen_flags: <defaults>
</compile_context>

<pallas_src>
import jax
import jax.numpy as jnp
from jax.experimental import pallas as pl
from jax.experimental.pallas import tpu as pltpu

LANE = 128


def _round_up(v, m):
    return ((v + m - 1) // m) * m


# ---------------------------------------------------------------------------
# VMEM budgeting (per chip generation)
# ---------------------------------------------------------------------------
def _vmem_ceiling():
    try:
        cap = int(pltpu.get_tpu_info().vmem_capacity_bytes)
    except Exception:
        cap = 64 * 1024 * 1024          # conservative fallback (v7x per-TC VMEM)
    # leave headroom for compiler scratch; never ask for more than ~100 MiB
    return min(int(cap * 0.85), 100 * 1024 * 1024)


def _pick_vmem_limit(needed_bytes):
    return int(min(max(needed_bytes, 16 * 1024 * 1024), _vmem_ceiling()))


def _fused_footprint_bytes(n_pad, f_pad, hidden, nc_pad):
    a = n_pad * n_pad * 2                                    # A_hat bf16 (single copy)
    x = n_pad * f_pad * 2
    w = (f_pad * hidden + 2 * hidden * hidden + hidden * nc_pad) * 2
    ss = 3 * 2 * hidden * 4 + 2 * nc_pad * 4
    out = n_pad * nc_pad * 4
    inter = 6 * n_pad * max(hidden, nc_pad) * 4              # live intermediates (f32 + bf16)
    return int((a + x + w + ss + out + inter) * 1.25)


def _tiled_footprint_bytes(tm, tk, f_out):
    per_in = (tm * tk * 2 + tk * f_out * 2 + tm * f_out * 2 + 2 * f_out * 4) * 2  # 2x buffered
    per_out = tm * f_out * 4 * 2
    acc = tm * f_out * 4
    return int((per_in + per_out + acc) * 1.5)


def _pick_tile(n_pad, target=512):
    t = min(target, n_pad)
    while n_pad % t:
        t -= LANE
    return max(t, LANE)


# ---------------------------------------------------------------------------
# Fused whole-graph kernel (A_hat resident in VMEM, no grid, no double-buffer)
# ---------------------------------------------------------------------------
def fused_gcn_kernel(a_ref, x_ref, w1_ref, w2_ref, w3_ref, w4_ref,
                     ss1_ref, ss2_ref, ss3_ref, b4_ref, o_ref):
    a = a_ref[...]                                   # [Np, Np] bf16, single VMEM copy

    def prop(h_bf16, w_ref):
        # GCN propagation: A_hat @ (H @ W). Both matmuls on the MXU, f32 accumulation.
        xw = jnp.dot(h_bf16, w_ref[...], preferred_element_type=jnp.float32)
        return jnp.dot(a, xw.astype(jnp.bfloat16),
                       preferred_element_type=jnp.float32)

    ss1 = ss1_ref[...]                               # [2, H] f32: row0=scale, row1=shift'
    ss2 = ss2_ref[...]
    ss3 = ss3_ref[...]

    # layer 1: relu(scale1 * conv1(x) + shift1')   (conv bias folded into shift')
    h1 = jnp.maximum(prop(x_ref[...], w1_ref) * ss1[0:1, :] + ss1[1:2, :], 0.0)
    h1 = h1.astype(jnp.bfloat16)                     # keep live residual in bf16
    # TODO(synk): dropout(p=0.5) is identity here (inference semantics).
    # layer 2
    h2 = jnp.maximum(prop(h1, w2_ref) * ss2[0:1, :] + ss2[1:2, :], 0.0)
    # layer 3 + residual (x1), residual kept on-chip (no HBM round-trip)
    h3 = jnp.maximum(prop(h2.astype(jnp.bfloat16), w3_ref) * ss3[0:1, :]
                     + ss3[1:2, :], 0.0) + h1.astype(jnp.float32)
    # layer 4: lane-dense padded projection, bias added, no BN/ReLU
    o_ref[...] = prop(h3.astype(jnp.bfloat16), w4_ref) + b4_ref[...]


def make_fused_forward(prepped):
    n, f = prepped["num_nodes"], prepped["num_features"]
    n_pad, f_pad, nc_pad = prepped["n_pad"], prepped["f_pad"], prepped["nc_pad"]
    hidden = prepped["hidden"]
    num_classes = prepped["num_classes"]
    vmem_limit = _pick_vmem_limit(
        _fused_footprint_bytes(n_pad, f_pad, hidden, nc_pad))

    call = pl.pallas_call(
        fused_gcn_kernel,
        out_shape=jax.ShapeDtypeStruct((n_pad, nc_pad), jnp.float32),
        in_specs=[pl.BlockSpec(memory_space=pltpu.MemorySpace.VMEM)
                  for _ in range(10)],
        out_specs=pl.BlockSpec(memory_space=pltpu.MemorySpace.VMEM),
        compiler_params=pltpu.CompilerParams(vmem_limit_bytes=vmem_limit),
    )

    @jax.jit
    def forward(x):
        # pad + cast jitted together with the pallas_call (one dispatch)
        x_pad = jnp.zeros((n_pad, f_pad), jnp.bfloat16).at[:n, :f].set(
            x.astype(jnp.bfloat16))
        out_pad = call(prepped["a_pad"], x_pad,
                       prepped["w1"], prepped["w2"], prepped["w3"], prepped["w4"],
                       prepped["ss1"], prepped["ss2"], prepped["ss3"],
                       prepped["b4"])
        return out_pad[:n, :num_classes]

    return forward


# ---------------------------------------------------------------------------
# Large-N path: per-layer row('parallel') x K('arbitrary') tiled propagation
# ---------------------------------------------------------------------------
def xw_kernel(h_ref, w_ref, o_ref):
    o_ref[...] = jnp.dot(h_ref[...], w_ref[...],
                         preferred_element_type=jnp.float32).astype(o_ref.dtype)


def _compute_xw(h, w, tm, vmem_limit):
    n_pad, f_in = h.shape
    f_out = w.shape[1]
    return pl.pallas_call(
        xw_kernel,
        out_shape=jax.ShapeDtypeStruct((n_pad, f_out), jnp.bfloat16),
        grid=(n_pad // tm,),
        in_specs=[pl.BlockSpec((tm, f_in), lambda i: (i, 0)),
                  pl.BlockSpec((f_in, f_out), lambda i: (0, 0))],
        out_specs=pl.BlockSpec((tm, f_out), lambda i: (i, 0)),
        compiler_params=pltpu.CompilerParams(
            dimension_semantics=("parallel",),
            vmem_limit_bytes=vmem_limit),
    )(h, w)


def _make_prop_kernel(apply_relu, add_residual):
    def epilogue(acc, ss, res):
        h = acc * ss[0:1, :] + ss[1:2, :]
        if apply_relu:
            h = jnp.maximum(h, 0.0)
        if res is not None:
            h = h + res.astype(jnp.float32)
        return h

    if add_residual:
        def kernel(a_ref, xw_ref, ss_ref, res_ref, o_ref, acc_ref):
            k = pl.program_id(1)

            @pl.when(k == 0)
            def _():
                acc_ref[...] = jnp.zeros_like(acc_ref)

            acc_ref[...] += jnp.dot(a_ref[...], xw_ref[...],
                                    preferred_element_type=jnp.float32)

            @pl.when(k == pl.num_programs(1) - 1)
            def _():
                o_ref[...] = epilogue(acc_ref[...], ss_ref[...],
                                      res_ref[...]).astype(o_ref.dtype)
    else:
        def kernel(a_ref, xw_ref, ss_ref, o_ref, acc_ref):
            k = pl.program_id(1)

            @pl.when(k == 0)
            def _():
                acc_ref[...] = jnp.zeros_like(acc_ref)

            acc_ref[...] += jnp.dot(a_ref[...], xw_ref[...],
                                    preferred_element_type=jnp.float32)

            @pl.when(k == pl.num_programs(1) - 1)
            def _():
                o_ref[...] = epilogue(acc_ref[...], ss_ref[...],
                                      None).astype(o_ref.dtype)
    return kernel


def _gcn_layer_tiled(a_pad, h, w, ss, residual, apply_relu, out_dtype,
                     tm, tk, vmem_limit):
    n_pad = a_pad.shape[0]
    f_out = w.shape[1]
    xw = _compute_xw(h, w, tm, vmem_limit)                    # [n_pad, f_out] bf16

    in_specs = [
        pl.BlockSpec((tm, tk), lambda i, k: (i, k)),          # A row/K block (streamed)
        pl.BlockSpec((tk, f_out), lambda i, k: (k, 0)),       # XW K-block
        pl.BlockSpec((2, f_out), lambda i, k: (0, 0)),        # scale / shift
    ]
    operands = [a_pad, xw, ss]
    if residual is not None:
        in_specs.append(pl.BlockSpec((tm, f_out), lambda i, k: (i, 0)))
        operands.append(residual)

    return pl.pallas_call(
        _make_prop_kernel(apply_relu, residual is not None),
        out_shape=jax.ShapeDtypeStruct((n_pad, f_out), out_dtype),
        grid=(n_pad // tm, n_pad // tk),
        in_specs=in_specs,
        out_specs=pl.BlockSpec((tm, f_out), lambda i, k: (i, 0)),
        scratch_shapes=[pltpu.VMEM((tm, f_out), jnp.float32)],
        compiler_params=pltpu.CompilerParams(
            dimension_semantics=("parallel", "arbitrary"),
            vmem_limit_bytes=vmem_limit),
    )(*operands)


def make_tiled_forward(prepped, tm=None, tk=None):
    n, f = prepped["num_nodes"], prepped["num_features"]
    n_pad, f_pad, nc_pad = prepped["n_pad"], prepped["f_pad"], prepped["nc_pad"]
    hidden = prepped["hidden"]
    num_classes = prepped["num_classes"]
    tm = tm or _pick_tile(n_pad)
    tk = tk or _pick_tile(n_pad)
    vmem_limit = _pick_vmem_limit(
        _tiled_footprint_bytes(tm, tk, max(hidden, nc_pad, f_pad)))

    @jax.jit
    def forward(x):
        x_pad = jnp.zeros((n_pad, f_pad), jnp.bfloat16).at[:n, :f].set(
            x.astype(jnp.bfloat16))
        a = prepped["a_pad"]
        h1 = _gcn_layer_tiled(a, x_pad, prepped["w1"], prepped["ss1"], None,
                              True, jnp.bfloat16, tm, tk, vmem_limit)
        h2 = _gcn_layer_tiled(a, h1, prepped["w2"], prepped["ss2"], None,
                              True, jnp.bfloat16, tm, tk, vmem_limit)
        h3 = _gcn_layer_tiled(a, h2, prepped["w3"], prepped["ss3"], h1,
                              True, jnp.bfloat16, tm, tk, vmem_limit)
        out = _gcn_layer_tiled(a, h3, prepped["w4"], prepped["ss4"], None,
                               False, jnp.float32, tm, tk, vmem_limit)
        return out[:n, :num_classes]

    return forward


def make_forward(prepped):
    """Pick the fused (A_hat fully VMEM-resident) path when it fits, else tile."""
    needed = _fused_footprint_bytes(prepped["n_pad"], prepped["f_pad"],
                                    prepped["hidden"], prepped["nc_pad"])
    if needed <= _vmem_ceiling():
        return make_fused_forward(prepped)
    return make_tiled_forward(prepped)


# ---------------------------------------------------------------------------
# One-time preprocessing (hoisted out of the per-forward path)
# ---------------------------------------------------------------------------
def normalized_adjacency(edge_index, num_nodes):
    """Dense D^-1/2 (A + I) D^-1/2, matching torch_geometric gcn_norm."""
    src, dst = edge_index[0], edge_index[1]
    a = jnp.zeros((num_nodes, num_nodes), jnp.float32)
    a = a.at[dst, src].add(1.0)                        # message flows source -> target
    a = a + jnp.eye(num_nodes, dtype=jnp.float32)      # self loops
    deg = a.sum(axis=1)
    dinv = jnp.where(deg > 0, 1.0 / jnp.sqrt(deg), 0.0)
    return dinv[:, None] * a * dinv[None, :]


def prepare(params, edge_index, num_nodes):
    """Static-graph + parameter preprocessing, done once per graph/model."""
    num_features, hidden = params["w1"].shape
    num_classes = params["w4"].shape[1]
    n_pad = max(LANE, _round_up(num_nodes, LANE))
    f_pad = max(LANE, _round_up(num_features, LANE))
    nc_pad = max(LANE, _round_up(num_classes, LANE))

    a_hat = normalized_adjacency(edge_index, num_nodes)
    a_pad = jnp.zeros((n_pad, n_pad), jnp.float32).at[:num_nodes, :num_nodes].set(a_hat)

    # Fold GCNConv bias into eval-mode BN: relu(s*(h+b)+t) == relu(s*h + (s*b+t))
    def fold(i):
        s = params[f"bn{i}_scale"]
        t = params[f"bn{i}_shift"] + s * params[f"b{i}"]
        return jnp.stack([s, t], axis=0).astype(jnp.float32)      # [2, hidden]

    w1_pad = jnp.zeros((f_pad, hidden), jnp.float32).at[:num_features, :].set(params["w1"])
    w4_pad = jnp.zeros((hidden, nc_pad), jnp.float32).at[:, :num_classes].set(params["w4"])
    b4_pad = jnp.zeros((1, nc_pad), jnp.float32).at[0, :num_classes].set(params["b4"])
    ss4 = jnp.concatenate([jnp.ones((1, nc_pad), jnp.float32), b4_pad], axis=0)

    return {
        "a_pad": a_pad.astype(jnp.bfloat16),
        "w1": w1_pad.astype(jnp.bfloat16),
        "w2": params["w2"].astype(jnp.bfloat16),
        "w3": params["w3"].astype(jnp.bfloat16),
        "w4": w4_pad.astype(jnp.bfloat16),
        "ss1": fold(1), "ss2": fold(2), "ss3": fold(3),
        "b4": b4_pad, "ss4": ss4,
        "num_nodes": num_nodes, "num_features": num_features,
        "num_classes": num_classes, "hidden": hidden,
        "n_pad": n_pad, "f_pad": f_pad, "nc_pad": nc_pad,
    }


# ---------------------------------------------------------------------------
# Parameter init (eval-mode BN stats folded to scale/shift)
# ---------------------------------------------------------------------------
def glorot(key, shape):
    fan_in, fan_out = shape
    lim = (6.0 / (fan_in + fan_out)) ** 0.5
    return jax.random.uniform(key, shape, jnp.float32, -lim, lim)


def init_params(key, num_features=64, hidden=128, num_classes=1):
    ks = jax.random.split(key, 10)
    eps = 1e-5
    params = {}
    dims = [(num_features, hidden), (hidden, hidden), (hidden, hidden),
            (hidden, num_classes)]
    for i, (din, dout) in enumerate(dims, start=1):
        params[f"w{i}"] = glorot(ks[i - 1], (din, dout))
        params[f"b{i}"] = jnp.zeros((dout,), jnp.float32)
    for i in range(1, 4):
        gamma = 1.0 + 0.1 * jax.random.normal(ks[3 + i], (dims[i - 1][1],))
        beta = 0.1 * jax.random.normal(ks[6 + i], (dims[i - 1][1],))
        running_mean = jnp.zeros((dims[i - 1][1],), jnp.float32)
        running_var = jnp.ones((dims[i - 1][1],), jnp.float32)
        scale = gamma / jnp.sqrt(running_var + eps)
        shift = beta - running_mean * scale
        params[f"bn{i}_scale"] = scale.astype(jnp.float32)
        params[f"bn{i}_shift"] = shift.astype(jnp.float32)
    return params


if __name__ == "__main__":
    key = jax.random.PRNGKey(0)
    k_x, k_p = jax.random.split(key)

    num_nodes = 16
    num_features = 64
    hidden = 128
    num_classes = 1

    # deterministic node features
    x = jax.random.normal(k_x, (num_nodes, num_features), jnp.float32)

    # deterministic undirected ring graph: i <-> (i+1) mod N  -> [2, 2N] edges
    idx = jnp.arange(num_nodes)
    nxt = (idx + 1) % num_nodes
    edge_index = jnp.stack([
        jnp.concatenate([idx, nxt]),
        jnp.concatenate([nxt, idx]),
    ], axis=0).astype(jnp.int32)

    params = init_params(k_p, num_features, hidden, num_classes)

    # one-time graph/parameter preprocessing (hoisted out of the forward path)
    prepped = prepare(params, edge_index, num_nodes)

    # primary path: small graph -> fused, un-gridded, fully VMEM-resident
    forward = make_forward(prepped)
    out = forward(x)
    jax.block_until_ready(out)
    assert out.shape == (num_nodes, num_classes)
    assert bool(jnp.all(jnp.isfinite(out)))

    # also exercise the large-N row/K-tiled path on the same padded graph and
    # check it agrees with the fused kernel.
    out_tiled = make_tiled_forward(prepped)(x)
    jax.block_until_ready(out_tiled)
    assert out_tiled.shape == (num_nodes, num_classes)
    assert bool(jnp.allclose(out, out_tiled, rtol=1e-2, atol=1e-2))

    print("KERNEL_OK")
</pallas_src>

<mosaic_0001>
module attributes {stable_mosaic.version = 11 : i64} {
  func.func @fused_gcn_kernel(%arg0: memref<128x128xbf16, #tpu.memory_space<vmem>>, %arg1: memref<128x128xbf16, #tpu.memory_space<vmem>>, %arg2: memref<128x128xbf16, #tpu.memory_space<vmem>>, %arg3: memref<128x128xbf16, #tpu.memory_space<vmem>>, %arg4: memref<128x128xbf16, #tpu.memory_space<vmem>>, %arg5: memref<128x128xbf16, #tpu.memory_space<vmem>>, %arg6: memref<2x128xf32, #tpu.memory_space<vmem>>, %arg7: memref<2x128xf32, #tpu.memory_space<vmem>>, %arg8: memref<2x128xf32, #tpu.memory_space<vmem>>, %arg9: memref<1x128xf32, #tpu.memory_space<vmem>>, %arg10: memref<128x128xf32, #tpu.memory_space<vmem>>) attributes {dimension_semantics = [], scalar_prefetch = 0 : i64, scratch_operands = 0 : i64, tpu.core_type = #tpu.core_type<tc>} {
    %c0 = arith.constant 0 : index
    %c0_0 = arith.constant 0 : index
    %0 = vector.load %arg0[%c0, %c0_0] : memref<128x128xbf16, #tpu.memory_space<vmem>>, vector<128x128xbf16>
    %c0_1 = arith.constant 0 : index
    %c0_2 = arith.constant 0 : index
    %1 = vector.load %arg6[%c0_1, %c0_2] : memref<2x128xf32, #tpu.memory_space<vmem>>, vector<2x128xf32>
    %c0_3 = arith.constant 0 : index
    %c0_4 = arith.constant 0 : index
    %2 = vector.load %arg7[%c0_3, %c0_4] : memref<2x128xf32, #tpu.memory_space<vmem>>, vector<2x128xf32>
    %c0_5 = arith.constant 0 : index
    %c0_6 = arith.constant 0 : index
    %3 = vector.load %arg8[%c0_5, %c0_6] : memref<2x128xf32, #tpu.memory_space<vmem>>, vector<2x128xf32>
    %c0_7 = arith.constant 0 : index
    %c0_8 = arith.constant 0 : index
    %4 = vector.load %arg1[%c0_7, %c0_8] : memref<128x128xbf16, #tpu.memory_space<vmem>>, vector<128x128xbf16>
    %c0_9 = arith.constant 0 : index
    %c0_10 = arith.constant 0 : index
    %5 = vector.load %arg2[%c0_9, %c0_10] : memref<128x128xbf16, #tpu.memory_space<vmem>>, vector<128x128xbf16>
    %cst = arith.constant dense<0.000000e+00> : vector<128x128xf32>
    %6 = tpu.matmul %4, %5, %cst {dimension_numbers = #tpu.dot_dimension_numbers<[1], [0], [0], [1], [0, 0, 1, 1], [], []>} : vector<128x128xbf16>, vector<128x128xbf16>, vector<128x128xf32> -> vector<128x128xf32>
    %7 = arith.truncf %6 : vector<128x128xf32> to vector<128x128xbf16>
    %cst_11 = arith.constant dense<0.000000e+00> : vector<128x128xf32>
    %8 = tpu.matmul %0, %7, %cst_11 {dimension_numbers = #tpu.dot_dimension_numbers<[1], [0], [0], [1], [0, 0, 1, 1], [], []>} : vector<128x128xbf16>, vector<128x128xbf16>, vector<128x128xf32> -> vector<128x128xf32>
    %9 = vector.extract_strided_slice %1 {offsets = [0, 0], sizes = [1, 128], strides = [1, 1]} : vector<2x128xf32> to vector<1x128xf32>
    %10 = vector.broadcast %9 : vector<1x128xf32> to vector<128x128xf32>
    %11 = arith.mulf %8, %10 : vector<128x128xf32>
    %12 = vector.extract_strided_slice %1 {offsets = [1, 0], sizes = [1, 128], strides = [1, 1]} : vector<2x128xf32> to vector<1x128xf32>
    %13 = vector.broadcast %12 : vector<1x128xf32> to vector<128x128xf32>
    %14 = arith.addf %11, %13 : vector<128x128xf32>
    %cst_12 = arith.constant 0.000000e+00 : f32
    %15 = vector.broadcast %cst_12 : f32 to vector<128x128xf32>
    %16 = arith.maximumf %14, %15 : vector<128x128xf32>
    %17 = arith.truncf %16 : vector<128x128xf32> to vector<128x128xbf16>
    %c0_13 = arith.constant 0 : index
    %c0_14 = arith.constant 0 : index
    %18 = vector.load %arg3[%c0_13, %c0_14] : memref<128x128xbf16, #tpu.memory_space<vmem>>, vector<128x128xbf16>
    %cst_15 = arith.constant dense<0.000000e+00> : vector<128x128xf32>
    %19 = tpu.matmul %17, %18, %cst_15 {dimension_numbers = #tpu.dot_dimension_numbers<[1], [0], [0], [1], [0, 0, 1, 1], [], []>} : vector<128x128xbf16>, vector<128x128xbf16>, vector<128x128xf32> -> vector<128x128xf32>
    %20 = arith.truncf %19 : vector<128x128xf32> to vector<128x128xbf16>
    %cst_16 = arith.constant dense<0.000000e+00> : vector<128x128xf32>
    %21 = tpu.matmul %0, %20, %cst_16 {dimension_numbers = #tpu.dot_dimension_numbers<[1], [0], [0], [1], [0, 0, 1, 1], [], []>} : vector<128x128xbf16>, vector<128x128xbf16>, vector<128x128xf32> -> vector<128x128xf32>
    %22 = vector.extract_strided_slice %2 {offsets = [0, 0], sizes = [1, 128], strides = [1, 1]} : vector<2x128xf32> to vector<1x128xf32>
    %23 = vector.broadcast %22 : vector<1x128xf32> to vector<128x128xf32>
    %24 = arith.mulf %21, %23 : vector<128x128xf32>
    %25 = vector.extract_strided_slice %2 {offsets = [1, 0], sizes = [1, 128], strides = [1, 1]} : vector<2x128xf32> to vector<1x128xf32>
    %26 = vector.broadcast %25 : vector<1x128xf32> to vector<128x128xf32>
    %27 = arith.addf %24, %26 : vector<128x128xf32>
    %cst_17 = arith.constant 0.000000e+00 : f32
    %28 = vector.broadcast %cst_17 : f32 to vector<128x128xf32>
    %29 = arith.maximumf %27, %28 : vector<128x128xf32>
    %30 = arith.truncf %29 : vector<128x128xf32> to vector<128x128xbf16>
    %c0_18 = arith.constant 0 : index
    %c0_19 = arith.constant 0 : index
    %31 = vector.load %arg4[%c0_18, %c0_19] : memref<128x128xbf16, #tpu.memory_space<vmem>>, vector<128x128xbf16>
    %cst_20 = arith.constant dense<0.000000e+00> : vector<128x128xf32>
    %32 = tpu.matmul %30, %31, %cst_20 {dimension_numbers = #tpu.dot_dimension_numbers<[1], [0], [0], [1], [0, 0, 1, 1], [], []>} : vector<128x128xbf16>, vector<128x128xbf16>, vector<128x128xf32> -> vector<128x128xf32>
    %33 = arith.truncf %32 : vector<128x128xf32> to vector<128x128xbf16>
    %cst_21 = arith.constant dense<0.000000e+00> : vector<128x128xf32>
    %34 = tpu.matmul %0, %33, %cst_21 {dimension_numbers = #tpu.dot_dimension_numbers<[1], [0], [0], [1], [0, 0, 1, 1], [], []>} : vector<128x128xbf16>, vector<128x128xbf16>, vector<128x128xf32> -> vector<128x128xf32>
    %35 = vector.extract_strided_slice %3 {offsets = [0, 0], sizes = [1, 128], strides = [1, 1]} : vector<2x128xf32> to vector<1x128xf32>
    %36 = vector.broadcast %35 : vector<1x128xf32> to vector<128x128xf32>
    %37 = arith.mulf %34, %36 : vector<128x128xf32>
    %38 = vector.extract_strided_slice %3 {offsets = [1, 0], sizes = [1, 128], strides = [1, 1]} : vector<2x128xf32> to vector<1x128xf32>
    %39 = vector.broadcast %38 : vector<1x128xf32> to vector<128x128xf32>
    %40 = arith.addf %37, %39 : vector<128x128xf32>
    %cst_22 = arith.constant 0.000000e+00 : f32
    %41 = vector.broadcast %cst_22 : f32 to vector<128x128xf32>
    %42 = arith.maximumf %40, %41 : vector<128x128xf32>
    %43 = arith.extf %17 : vector<128x128xbf16> to vector<128x128xf32>
    %44 = arith.addf %42, %43 : vector<128x128xf32>
    %45 = arith.truncf %44 : vector<128x128xf32> to vector<128x128xbf16>
    %c0_23 = arith.constant 0 : index
    %c0_24 = arith.constant 0 : index
    %46 = vector.load %arg5[%c0_23, %c0_24] : memref<128x128xbf16, #tpu.memory_space<vmem>>, vector<128x128xbf16>
    %cst_25 = arith.constant dense<0.000000e+00> : vector<128x128xf32>
    %47 = tpu.matmul %45, %46, %cst_25 {dimension_numbers = #tpu.dot_dimension_numbers<[1], [0], [0], [1], [0, 0, 1, 1], [], []>} : vector<128x128xbf16>, vector<128x128xbf16>, vector<128x128xf32> -> vector<128x128xf32>
    %48 = arith.truncf %47 : vector<128x128xf32> to vector<128x128xbf16>
    %cst_26 = arith.constant dense<0.000000e+00> : vector<128x128xf32>
    %49 = tpu.matmul %0, %48, %cst_26 {dimension_numbers = #tpu.dot_dimension_numbers<[1], [0], [0], [1], [0, 0, 1, 1], [], []>} : vector<128x128xbf16>, vector<128x128xbf16>, vector<128x128xf32> -> vector<128x128xf32>
    %c0_27 = arith.constant 0 : index
    %c0_28 = arith.constant 0 : index
    %50 = vector.load %arg9[%c0_27, %c0_28] : memref<1x128xf32, #tpu.memory_space<vmem>>, vector<1x128xf32>
    %51 = vector.broadcast %50 : vector<1x128xf32> to vector<128x128xf32>
    %52 = arith.addf %49, %51 : vector<128x128xf32>
    %c0_29 = arith.constant 0 : index
    %c0_30 = arith.constant 0 : index
    %53 = vector.load %arg10[%c0_29, %c0_30] : memref<128x128xf32, #tpu.memory_space<vmem>>, vector<128x128xf32>
    tpu.vector_store %arg10[%c0_29, %c0_30], %52 {strides = array<i32>} : memref<128x128xf32, #tpu.memory_space<vmem>>, vector<128x128xf32>,
    return
  }
}

</mosaic_0001>

<llo_original>
// kernel: forward.1
$region0: #{forward.1}
  #allocation0 [shape = 'u32[]', space=smem, size = 0x4, offset = 0x4, fixed_abs, tag = 'smem constant byte address 0x4 - core index']
  #allocation1 [shape = 'u32[144,128]{1,0:T(1,128)}', space=vmem, size = 0x12000, scoped, tag = 'internal scratch']
  %s0 = inlined_call_operand.hbm [shape: bf16[128,128], index: 0, kind: input, shape index: {}]
  %s1 = inlined_call_operand.vmem [shape: bf16[128,128], index: 1, kind: input, shape index: {}]
  %s2 = inlined_call_operand.hbm [shape: bf16[128,128], index: 2, kind: input, shape index: {}]
  %s3 = inlined_call_operand.hbm [shape: bf16[128,128], index: 3, kind: input, shape index: {}]
  %s4 = inlined_call_operand.vmem [shape: bf16[128,128], index: 4, kind: input, shape index: {}]
  %s5 = inlined_call_operand.vmem [shape: bf16[128,128], index: 5, kind: input, shape index: {}]
  %s6 = inlined_call_operand.hbm [shape: f32[2,128], index: 6, kind: input, shape index: {}]
  %s7 = inlined_call_operand.hbm [shape: f32[2,128], index: 7, kind: input, shape index: {}]
  %s8 = inlined_call_operand.vmem [shape: f32[2,128], index: 8, kind: input, shape index: {}]
  %s9 = inlined_call_operand.vmem [shape: f32[1,128], index: 9, kind: input, shape index: {}]
  %s10 = inlined_call_operand.vmem [shape: f32[128,128], index: 10, kind: output, shape index: {}]
  %s11 = sld [smem:[#allocation0]]
  $region70: #{forward.1} parent=0
    _
  %s13 = ssub.s32 1, %s11
  %s14 = scalar_select 0, %s13, %s11
  $region1: #{forward.1} parent=0
    #allocation2 [shape = 'u8[32768]{0}', space=vmem, size = 0x8000, scoped, tag = 'input window, operand 0, single buffered']
    #allocation3 [shape = 's32[1]{0}', space=sflag, size = 0x4, scoped, tag = 'scoped memory for forward.1']
    #allocation4 [shape = 'u8[32768]{0}', space=vmem, size = 0x8000, scoped, tag = 'input window, operand 2, single buffered']
    #allocation5 [shape = 's32[1]{0}', space=sflag, size = 0x4, scoped, tag = 'scoped memory for forward.1']
    #allocation6 [shape = 'u8[32768]{0}', space=vmem, size = 0x8000, scoped, tag = 'input window, operand 3, single buffered']
    #allocation7 [shape = 'u8[1024]{0}', space=vmem, size = 0x400, scoped, tag = 'input window, operand 6, single buffered']
    #allocation8 [shape = 's32[1]{0}', space=sflag, size = 0x4, scoped, tag = 'scoped memory for forward.1']
    #allocation9 [shape = 'u8[1024]{0}', space=vmem, size = 0x400, scoped, tag = 'input window, operand 7, single buffered']
    %15 = vsyncpa [#allocation3], 0
    %16 = vsyncpa [#allocation5], 0
    %17 = vsyncpa [#allocation8], 0
    // Predicated region
    $region2: #{forward.1} parent=1 // pred_check
      _
    $region3: #{forward.1} parent=1 // pred_check_branch
      %19 = sbr.rel (0) target = $region5
    $region4: #{forward.1} parent=1 // pred_region
      %s21 = ssub.s32 1024, 1024
      %22 = vsyncadd [#allocation3], %s21
      %s23 = sshll.u32 [#allocation2], 4
      %s24 = int_to_ptr.vmem [resolvable:$true] %s23
      %29 = dma.hbm_to_vmem [thread:$0]  %s0, 1024, %s24, [#allocation3], 64, 64, 4
    $region5: #{forward.1} parent=1 // pred_fallthru
      _
    // Predicated region
    $region6: #{forward.1} parent=1 // pred_check
      _
    $region7: #{forward.1} parent=1 // pred_check_branch
      %31 = sbr.rel (0) target = $region9
    $region8: #{forward.1} parent=1 // pred_region
      _
    $region9: #{forward.1} parent=1 // pred_fallthru
      _
    // Predicated region
    $region10: #{forward.1} parent=1 // pred_check
      _
    $region11: #{forward.1} parent=1 // pred_check_branch
      %33 = sbr.rel (0) target = $region13
    $region12: #{forward.1} parent=1 // pred_region
      %s35 = ssub.s32 1024, 1024
      %36 = vsyncadd [#allocation5], %s35
      %s37 = sshll.u32 [#allocation4], 4
      %s38 = int_to_ptr.vmem [resolvable:$true] %s37
      %43 = dma.hbm_to_vmem [thread:$0]  %s2, 1024, %s38, [#allocation5], 64, 64, 4
    $region13: #{forward.1} parent=1 // pred_fallthru
      _
    // Predicated region
    $region14: #{forward.1} parent=1 // pred_check
      _
    $region15: #{forward.1} parent=1 // pred_check_branch
      %45 = sbr.rel (0) target = $region17
    $region16: #{forward.1} parent=1 // pred_region
      %s47 = ssub.s32 1024, 1024
      %48 = vsyncadd [#allocation5], %s47
      %s49 = sshll.u32 [#allocation6], 4
      %s50 = int_to_ptr.vmem [resolvable:$true] %s49
      %55 = dma.hbm_to_vmem [thread:$0]  %s3, 1024, %s50, [#allocation5], 64, 64, 4
    $region17: #{forward.1} parent=1 // pred_fallthru
      _
    // Predicated region
    $region18: #{forward.1} parent=1 // pred_check
      _
    $region19: #{forward.1} parent=1 // pred_check_branch
      %57 = sbr.rel (0) target = $region21
    $region20: #{forward.1} parent=1 // pred_region
      _
    $region21: #{forward.1} parent=1 // pred_fallthru
      _
    // Predicated region
    $region22: #{forward.1} parent=1 // pred_check
      _
    $region23: #{forward.1} parent=1 // pred_check_branch
      %59 = sbr.rel (0) target = $region25
    $region24: #{forward.1} parent=1 // pred_region
      _
    $region25: #{forward.1} parent=1 // pred_fallthru
      _
    // Predicated region
    $region26: #{forward.1} parent=1 // pred_check
      _
    $region27: #{forward.1} parent=1 // pred_check_branch
      %61 = sbr.rel (0) target = $region29
    $region28: #{forward.1} parent=1 // pred_region
      %s63 = ssub.s32 32, 32
      %64 = vsyncadd [#allocation8], %s63
      %s66 = sshll.u32 [#allocation7], 4
      %s67 = int_to_ptr.vmem [resolvable:$true] %s66
      %69 = dma.hbm_to_vmem [thread:$0]  %s6, 32, %s67, [#allocation8]
    $region29: #{forward.1} parent=1 // pred_fallthru
      _
    // Predicated region
    $region30: #{forward.1} parent=1 // pred_check
      _
    $region31: #{forward.1} parent=1 // pred_check_branch
      %71 = sbr.rel (0) target = $region33
    $region32: #{forward.1} parent=1 // pred_region
      %s73 = ssub.s32 32, 32
      %74 = vsyncadd [#allocation8], %s73
      %s76 = sshll.u32 [#allocation9], 4
      %s77 = int_to_ptr.vmem [resolvable:$true] %s76
      %79 = dma.hbm_to_vmem [thread:$0]  %s7, 32, %s77, [#allocation8]
    $region33: #{forward.1} parent=1 // pred_fallthru
      _
    // Predicated region
    $region34: #{forward.1} parent=1 // pred_check
      _
    $region35: #{forward.1} parent=1 // pred_check_branch
      %81 = sbr.rel (0) target = $region37
    $region36: #{forward.1} parent=1 // pred_region
      _
    $region37: #{forward.1} parent=1 // pred_fallthru
      _
    // Predicated region
    $region38: #{forward.1} parent=1 // pred_check
      _
    $region39: #{forward.1} parent=1 // pred_check_branch
      %83 = sbr.rel (0) target = $region41
    $region40: #{forward.1} parent=1 // pred_region
      _
    $region41: #{forward.1} parent=1 // pred_fallthru
      _
    // Predicated region
    $region42: #{forward.1} parent=1 // pred_check
      _
    $region43: #{forward.1} parent=1 // pred_check_branch
      %85 = sbr.rel (0) target = $region45
    $region44: #{forward.1} parent=1 // pred_region
      %86 = dma.done [#allocation3], 1024
    $region45: #{forward.1} parent=1 // pred_fallthru
      _
    // Predicated region
    $region46: #{forward.1} parent=1 // pred_check
      _
    $region47: #{forward.1} parent=1 // pred_check_branch
      %88 = sbr.rel (0) target = $region49
    $region48: #{forward.1} parent=1 // pred_region
      %89 = dma.done [#allocation5], 1024
    $region49: #{forward.1} parent=1 // pred_fallthru
      _
    // Predicated region
    $region50: #{forward.1} parent=1 // pred_check
      _
    $region51: #{forward.1} parent=1 // pred_check_branch
      %91 = sbr.rel (0) target = $region53
    $region52: #{forward.1} parent=1 // pred_region
      %92 = dma.done [#allocation5], 1024
    $region53: #{forward.1} parent=1 // pred_fallthru
      _
    // Predicated region
    $region54: #{forward.1} parent=1 // pred_check
      _
    $region55: #{forward.1} parent=1 // pred_check_branch
      %94 = sbr.rel (0) target = $region57
    $region56: #{forward.1} parent=1 // pred_region
      %95 = dma.done [#allocation8], 32
    $region57: #{forward.1} parent=1 // pred_fallthru
      _
    // Predicated region
    $region58: #{forward.1} parent=1 // pred_check
      _
    $region59: #{forward.1} parent=1 // pred_check_branch
      %97 = sbr.rel (0) target = $region61
    $region60: #{forward.1} parent=1 // pred_region
      %98 = dma.done [#allocation8], 32
    $region61: #{forward.1} parent=1 // pred_fallthru
      _
    %v100 = vld [vmem:[#allocation2] sm:$0xf]
    %v101 = vld [vmem:[#allocation2 + $0x4] sm:$0xf]
    %v102 = vld [vmem:[#allocation2 + $0x8] sm:$0xf]
    %v103 = vld [vmem:[#allocation2 + $0xc] sm:$0xf]
    %v104 = vld [vmem:[#allocation2 + $0x10] sm:$0xf]
    %v105 = vld [vmem:[#allocation2 + $0x14] sm:$0xf]
    %v106 = vld [vmem:[#allocation2 + $0x18] sm:$0xf]
    %v107 = vld [vmem:[#allocation2 + $0x1c] sm:$0xf]
    %v108 = vld [vmem:[#allocation2 + $0x20] sm:$0xf]
    %v109 = vld [vmem:[#allocation2 + $0x24] sm:$0xf]
    %v110 = vld [vmem:[#allocation2 + $0x28] sm:$0xf]
    %v111 = vld [vmem:[#allocation2 + $0x2c] sm:$0xf]
    %v112 = vld [vmem:[#allocation2 + $0x30] sm:$0xf]
    %v113 = vld [vmem:[#allocation2 + $0x34] sm:$0xf]
    %v114 = vld [vmem:[#allocation2 + $0x38] sm:$0xf]
    %v115 = vld [vmem:[#allocation2 + $0x3c] sm:$0xf]
    %v116 = vld [vmem:[#allocation7] sm:$0x3]
    %v117 = vld [vmem:[#allocation9] sm:$0x3]
    %v118 = vld [vmem:[%s8] sm:$0x3]
    %v119 = vld [vmem:[%s1] sm:$0xf]
    %v120 = vld [vmem:[%s1 + $0x4] sm:$0xf]
    %v121 = vld [vmem:[%s1 + $0x8] sm:$0xf]
    %v122 = vld [vmem:[%s1 + $0xc] sm:$0xf]
    %v123 = vld [vmem:[%s1 + $0x10] sm:$0xf]
    %v124 = vld [vmem:[%s1 + $0x14] sm:$0xf]
    %v125 = vld [vmem:[%s1 + $0x18] sm:$0xf]
    %v126 = vld [vmem:[%s1 + $0x1c] sm:$0xf]
    %v127 = vld [vmem:[%s1 + $0x20] sm:$0xf]
    %v128 = vld [vmem:[%s1 + $0x24] sm:$0xf]
    %v129 = vld [vmem:[%s1 + $0x28] sm:$0xf]
    %v130 = vld [vmem:[%s1 + $0x2c] sm:$0xf]
    %v131 = vld [vmem:[%s1 + $0x30] sm:$0xf]
    %v132 = vld [vmem:[%s1 + $0x34] sm:$0xf]
    %v133 = vld [vmem:[%s1 + $0x38] sm:$0xf]
    %v134 = vld [vmem:[%s1 + $0x3c] sm:$0xf]
    %v135 = vld [vmem:[#allocation4] sm:$0xf]
    %v136 = vld [vmem:[#allocation4 + $0x4] sm:$0xf]
    %v137 = vld [vmem:[#allocation4 + $0x8] sm:$0xf]
    %v138 = vld [vmem:[#allocation4 + $0xc] sm:$0xf]
    %v139 = vld [vmem:[#allocation4 + $0x10] sm:$0xf]
    %v140 = vld [vmem:[#allocation4 + $0x14] sm:$0xf]
    %v141 = vld [vmem:[#allocation4 + $0x18] sm:$0xf]
    %v142 = vld [vmem:[#allocation4 + $0x1c] sm:$0xf]
    %v143 = vld [vmem:[#allocation4 + $0x20] sm:$0xf]
    %v144 = vld [vmem:[#allocation4 + $0x24] sm:$0xf]
    %v145 = vld [vmem:[#allocation4 + $0x28] sm:$0xf]
    %v146 = vld [vmem:[#allocation4 + $0x2c] sm:$0xf]
    %v147 = vld [vmem:[#allocation4 + $0x30] sm:$0xf]
    %v148 = vld [vmem:[#allocation4 + $0x34] sm:$0xf]
    %v149 = vld [vmem:[#allocation4 + $0x38] sm:$0xf]
    %v150 = vld [vmem:[#allocation4 + $0x3c] sm:$0xf]
    %v167 = vunpack.c.l.b16 %v119
    %v168 = vunpack.c.l.b16 %v120
    %v169 = vunpack.c.l.b16 %v121
    %v170 = vunpack.c.l.b16 %v122
    %v171 = vunpack.c.l.b16 %v123
    %v172 = vunpack.c.l.b16 %v124
    %v173 = vunpack.c.l.b16 %v125
    %v174 = vunpack.c.l.b16 %v126
    %v175 = vunpack.c.l.b16 %v127
    %v176 = vunpack.c.l.b16 %v128
    %v177 = vunpack.c.l.b16 %v129
    %v178 = vunpack.c.l.b16 %v130
    %v179 = vunpack.c.l.b16 %v131
    %v180 = vunpack.c.l.b16 %v132
    %v181 = vunpack.c.l.b16 %v133
    %v182 = vunpack.c.l.b16 %v134
    %v183 = vpack.c.b16 %v168, %v167
    %v184 = vpack.c.b16 %v170, %v169
    %v185 = vpack.c.b16 %v172, %v171
    %v186 = vpack.c.b16 %v174, %v173
    %v187 = vpack.c.b16 %v176, %v175
    %v188 = vpack.c.b16 %v178, %v177
    %v189 = vpack.c.b16 %v180, %v179
    %v190 = vpack.c.b16 %v182, %v181
    %v215 = vunpack.c.l.b16 %v135
    %v216 = vunpack.c.l.b16 %v136
    %v217 = vunpack.c.l.b16 %v137
    %v218 = vunpack.c.l.b16 %v138
    %v219 = vunpack.c.l.b16 %v139
    %v220 = vunpack.c.l.b16 %v140
    %v221 = vunpack.c.l.b16 %v141
    %v222 = vunpack.c.l.b16 %v142
    %v223 = vunpack.c.l.b16 %v143
    %v224 = vunpack.c.l.b16 %v144
    %v225 = vunpack.c.l.b16 %v145
    %v226 = vunpack.c.l.b16 %v146
    %v227 = vunpack.c.l.b16 %v147
    %v228 = vunpack.c.l.b16 %v148
    %v229 = vunpack.c.l.b16 %v149
    %v230 = vunpack.c.l.b16 %v150
    %v231 = vpack.c.b16 %v216, %v215
    %v232 = vpack.c.b16 %v218, %v217
    %v233 = vpack.c.b16 %v220, %v219
    %v234 = vpack.c.b16 %v222, %v221
    %v235 = vpack.c.b16 %v224, %v223
    %v236 = vpack.c.b16 %v226, %v225
    %v237 = vpack.c.b16 %v228, %v227
    %v238 = vpack.c.b16 %v230, %v229
    %247 = vmatprep.subr.bf16.mxu0 0
    %248 = vmatpush1.bf16.msra.mxu0 %v231
    %249 = vmatprep.subr.bf16.mxu0 0
    %250 = vmatpush1.bf16.msra.mxu0 %v232
    %251 = vmatprep.subr.bf16.mxu0 0
    %252 = vmatpush1.bf16.msra.mxu0 %v233
    %253 = vmatprep.subr.bf16.mxu0 0
    %254 = vmatpush1.bf16.msra.mxu0 %v234
    %255 = vmatprep.subr.bf16.mxu0 0
    %256 = vmatpush1.bf16.msra.mxu0 %v235
    %257 = vmatprep.subr.bf16.mxu0 0
    %258 = vmatpush1.bf16.msra.mxu0 %v236
    %259 = vmatprep.subr.bf16.mxu0 0
    %260 = vmatpush1.bf16.msra.mxu0 %v237
    %261 = vmatprep.subr.bf16.mxu0 0
    %262 = vmatpush1.bf16.msra.mxu0 %v238
    %263 = vmatprep.subr.bf16.mxu0 0
    %264 = vmatpush1.bf16.msra.mxu0 0
    %265 = vmatprep.subr.bf16.mxu0 0
    %266 = vmatpush1.bf16.msra.mxu0 0
    %267 = vmatprep.subr.bf16.mxu0 0
    %268 = vmatpush1.bf16.msra.mxu0 0
    %269 = vmatprep.subr.bf16.mxu0 0
    %270 = vmatpush1.bf16.msra.mxu0 0
    %271 = vmatprep.subr.bf16.mxu0 0
    %272 = vmatpush1.bf16.msra.mxu0 0
    %273 = vmatprep.subr.bf16.mxu0 0
    %274 = vmatpush1.bf16.msra.mxu0 0
    %275 = vmatprep.subr.bf16.mxu0 0
    %276 = vmatpush1.bf16.msra.mxu0 0
    %277 = vmatprep.subr.bf16.mxu0 0
    %278 = vmatpush1.bf16.msra.mxu0 0
    %279 = vmatprep.mubr.bf16.mxu0 0
    %280 = vmatmul.mubr.bf16.gmra.mrb[0].mxu0 %v183
    %v281 = vpop.f32.mrb[0].mxu0
    %v282 = vadd.f32 0.0, %v281
    %v283 = vpop.f32.mrb[0].mxu0
    %v284 = vpop.f32.mrb[0].mxu0
    %v285 = vadd.f32 0.0, %v284
    %v286 = vpop.f32.mrb[0].mxu0
    %287 = vmatprep.mubr.bf16.mxu0 0
    %288 = vmatmul.mubr.bf16.gmra.mrb[0].mxu0 %v184
    %v289 = vpop.f32.mrb[0].mxu0
    %v290 = vadd.f32 0.0, %v289
    %v291 = vpop.f32.mrb[0].mxu0
    %v292 = vpop.f32.mrb[0].mxu0
    %v293 = vadd.f32 0.0, %v292
    %v294 = vpop.f32.mrb[0].mxu0
    %295 = vmatprep.mubr.bf16.mxu0 0
    %296 = vmatmul.mubr.bf16.gmra.mrb[0].mxu0 %v185
    %v297 = vpop.f32.mrb[0].mxu0
    %v298 = vadd.f32 0.0, %v297
    %v299 = vpop.f32.mrb[0].mxu0
    %v300 = vpop.f32.mrb[0].mxu0
    %v301 = vadd.f32 0.0, %v300
    %v302 = vpop.f32.mrb[0].mxu0
    %303 = vmatprep.mubr.bf16.mxu0 0
    %304 = vmatmul.mubr.bf16.gmra.mrb[0].mxu0 %v186
    %v305 = vpop.f32.mrb[0].mxu0
    %v306 = vadd.f32 0.0, %v305
    %v307 = vpop.f32.mrb[0].mxu0
    %v308 = vpop.f32.mrb[0].mxu0
    %v309 = vadd.f32 0.0, %v308
    %v310 = vpop.f32.mrb[0].mxu0
    %311 = vmatprep.mubr.bf16.mxu0 0
    %312 = vmatmul.mubr.bf16.gmra.mrb[0].mxu0 %v187
    %v313 = vpop.f32.mrb[0].mxu0
    %v314 = vadd.f32 0.0, %v313
    %v315 = vpop.f32.mrb[0].mxu0
    %v316 = vpop.f32.mrb[0].mxu0
    %v317 = vadd.f32 0.0, %v316
    %v318 = vpop.f32.mrb[0].mxu0
    %319 = vmatprep.mubr.bf16.mxu0 0
    %320 = vmatmul.mubr.bf16.gmra.mrb[0].mxu0 %v188
    %v321 = vpop.f32.mrb[0].mxu0
    %v322 = vadd.f32 0.0, %v321
    %v323 = vpop.f32.mrb[0].mxu0
    %v324 = vpop.f32.mrb[0].mxu0
    %v325 = vadd.f32 0.0, %v324
    %v326 = vpop.f32.mrb[0].mxu0
    %327 = vmatprep.mubr.bf16.mxu0 0
    %328 = vmatmul.mubr.bf16.gmra.mrb[0].mxu0 %v189
    %v329 = vpop.f32.mrb[0].mxu0
    %v330 = vadd.f32 0.0, %v329
    %v331 = vpop.f32.mrb[0].mxu0
    %v332 = vpop.f32.mrb[0].mxu0
    %v333 = vadd.f32 0.0, %v332
    %v334 = vpop.f32.mrb[0].mxu0
    %335 = vmatprep.mubr.bf16.mxu0 0
    %336 = vmatmul.mubr.bf16.gmra.mrb[0].mxu0 %v190
    %v337 = vpop.f32.mrb[0].mxu0
    %v338 = vadd.f32 0.0, %v337
    %v339 = vpop.f32.mrb[0].mxu0
    %v340 = vpop.f32.mrb[0].mxu0
    %v341 = vadd.f32 0.0, %v340
    %v342 = vpop.f32.mrb[0].mxu0
    %343 = vdwg.mxu0
    %v344 = vpack.c.bf16 %v285, %v282
    %v345 = vpack.c.bf16 %v293, %v290
    %v346 = vpack.c.bf16 %v301, %v298
    %v347 = vpack.c.bf16 %v309, %v306
    %v348 = vpack.c.bf16 %v317, %v314
    %v349 = vpack.c.bf16 %v325, %v322
    %v350 = vpack.c.bf16 %v333, %v330
    %v351 = vpack.c.bf16 %v341, %v338
    %v368 = vunpack.c.l.b16 %v100
    %v369 = vunpack.c.l.b16 %v101
    %v370 = vunpack.c.l.b16 %v102
    %v371 = vunpack.c.l.b16 %v103
    %v372 = vunpack.c.l.b16 %v104
    %v373 = vunpack.c.l.b16 %v105
    %v374 = vunpack.c.l.b16 %v106
    %v375 = vunpack.c.l.b16 %v107
    %v376 = vunpack.c.l.b16 %v108
    %v377 = vunpack.c.l.b16 %v109
    %v378 = vunpack.c.l.b16 %v110
    %v379 = vunpack.c.l.b16 %v111
    %v380 = vunpack.c.l.b16 %v112
    %v381 = vunpack.c.l.b16 %v113
    %v382 = vunpack.c.l.b16 %v114
    %v383 = vunpack.c.l.b16 %v115
    %v384 = vpack.c.b16 %v369, %v368
    %v385 = vpack.c.b16 %v371, %v370
    %v386 = vpack.c.b16 %v373, %v372
    %v387 = vpack.c.b16 %v375, %v374
    %v388 = vpack.c.b16 %v377, %v376
    %v389 = vpack.c.b16 %v379, %v378
    %v390 = vpack.c.b16 %v381, %v380
    %v391 = vpack.c.b16 %v383, %v382
    %400 = vmatprep.subr.bf16.mxu0 0
    %401 = vmatpush1.bf16.msra.mxu0 %v344
    %402 = vmatprep.subr.bf16.mxu0 0
    %403 = vmatpush1.bf16.msra.mxu0 %v345
    %404 = vmatprep.subr.bf16.mxu0 0
    %405 = vmatpush1.bf16.msra.mxu0 %v346
    %406 = vmatprep.subr.bf16.mxu0 0
    %407 = vmatpush1.bf16.msra.mxu0 %v347
    %408 = vmatprep.subr.bf16.mxu0 0
    %409 = vmatpush1.bf16.msra.mxu0 %v348
    %410 = vmatprep.subr.bf16.mxu0 0
    %411 = vmatpush1.bf16.msra.mxu0 %v349
    %412 = vmatprep.subr.bf16.mxu0 0
    %413 = vmatpush1.bf16.msra.mxu0 %v350
    %414 = vmatprep.subr.bf16.mxu0 0
    %415 = vmatpush1.bf16.msra.mxu0 %v351
    %416 = vmatprep.subr.bf16.mxu0 0
    %417 = vmatpush1.bf16.msra.mxu0 0
    %418 = vmatprep.subr.bf16.mxu0 0
    %419 = vmatpush1.bf16.msra.mxu0 0
    %420 = vmatprep.subr.bf16.mxu0 0
    %421 = vmatpush1.bf16.msra.mxu0 0
    %422 = vmatprep.subr.bf16.mxu0 0
    %423 = vmatpush1.bf16.msra.mxu0 0
    %424 = vmatprep.subr.bf16.mxu0 0
    %425 = vmatpush1.bf16.msra.mxu0 0
    %426 = vmatprep.subr.bf16.mxu0 0
    %427 = vmatpush1.bf16.msra.mxu0 0
    %428 = vmatprep.subr.bf16.mxu0 0
    %429 = vmatpush1.bf16.msra.mxu0 0
    %430 = vmatprep.subr.bf16.mxu0 0
    %431 = vmatpush1.bf16.msra.mxu0 0
    %432 = vmatprep.mubr.bf16.mxu0 0
    %433 = vmatmul.mubr.bf16.gmra.mrb[0].mxu0 %v384
    %v434 = vpop.f32.mrb[0].mxu0
    %v435 = vadd.f32 0.0, %v434
    %v436 = vpop.f32.mrb[0].mxu0
    %v437 = vpop.f32.mrb[0].mxu0
    %v438 = vadd.f32 0.0, %v437
    %v439 = vpop.f32.mrb[0].mxu0
    %440 = vmatprep.mubr.bf16.mxu0 0
    %441 = vmatmul.mubr.bf16.gmra.mrb[0].mxu0 %v385
    %v442 = vpop.f32.mrb[0].mxu0
    %v443 = vadd.f32 0.0, %v442
    %v444 = vpop.f32.mrb[0].mxu0
    %v445 = vpop.f32.mrb[0].mxu0
    %v446 = vadd.f32 0.0, %v445
    %v447 = vpop.f32.mrb[0].mxu0
    %448 = vmatprep.mubr.bf16.mxu0 0
    %449 = vmatmul.mubr.bf16.gmra.mrb[0].mxu0 %v386
    %v450 = vpop.f32.mrb[0].mxu0
    %v451 = vadd.f32 0.0, %v450
    %v452 = vpop.f32.mrb[0].mxu0
    %v453 = vpop.f32.mrb[0].mxu0
    %v454 = vadd.f32 0.0, %v453
    %v455 = vpop.f32.mrb[0].mxu0
    %456 = vmatprep.mubr.bf16.mxu0 0
    %457 = vmatmul.mubr.bf16.gmra.mrb[0].mxu0 %v387
    %v458 = vpop.f32.mrb[0].mxu0
    %v459 = vadd.f32 0.0, %v458
    %v460 = vpop.f32.mrb[0].mxu0
    %v461 = vpop.f32.mrb[0].mxu0
    %v462 = vadd.f32 0.0, %v461
    %v463 = vpop.f32.mrb[0].mxu0
    %464 = vmatprep.mubr.bf16.mxu0 0
    %465 = vmatmul.mubr.bf16.gmra.mrb[0].mxu0 %v388
    %v466 = vpop.f32.mrb[0].mxu0
    %v467 = vadd.f32 0.0, %v466
    %v468 = vpop.f32.mrb[0].mxu0
    %v469 = vpop.f32.mrb[0].mxu0
    %v470 = vadd.f32 0.0, %v469
    %v471 = vpop.f32.mrb[0].mxu0
    %472 = vmatprep.mubr.bf16.mxu0 0
    %473 = vmatmul.mubr.bf16.gmra.mrb[0].mxu0 %v389
    %v474 = vpop.f32.mrb[0].mxu0
    %v475 = vadd.f32 0.0, %v474
    %v476 = vpop.f32.mrb[0].mxu0
    %v477 = vpop.f32.mrb[0].mxu0
    %v478 = vadd.f32 0.0, %v477
    %v479 = vpop.f32.mrb[0].mxu0
    %480 = vmatprep.mubr.bf16.mxu0 0
    %481 = vmatmul.mubr.bf16.gmra.mrb[0].mxu0 %v390
    %v482 = vpop.f32.mrb[0].mxu0
    %v483 = vadd.f32 0.0, %v482
    %v484 = vpop.f32.mrb[0].mxu0
    %v485 = vpop.f32.mrb[0].mxu0
    %v486 = vadd.f32 0.0, %v485
    %v487 = vpop.f32.mrb[0].mxu0
    %488 = vmatprep.mubr.bf16.mxu0 0
    %489 = vmatmul.mubr.bf16.gmra.mrb[0].mxu0 %v391
    %v490 = vpop.f32.mrb[0].mxu0
    %v491 = vadd.f32 0.0, %v490
    %v492 = vpop.f32.mrb[0].mxu0
    %v493 = vpop.f32.mrb[0].mxu0
    %v494 = vadd.f32 0.0, %v493
    %v495 = vpop.f32.mrb[0].mxu0
    %496 = vdwg.mxu0
    %v497 = vlaneseq
    %v498 = vshrl.u32 %v497, 7
    %v499 = vsub.s32 0, %v498
    %v500 = vrot.slane %v116, %v499
    %v501 = vmul.f32 %v435, %v500
    %v502 = vmul.f32 %v438, %v500
    %v503 = vmul.f32 %v443, %v500
    %v504 = vmul.f32 %v446, %v500
    %v505 = vmul.f32 %v451, %v500
    %v506 = vmul.f32 %v454, %v500
    %v507 = vmul.f32 %v459, %v500
    %v508 = vmul.f32 %v462, %v500
    %v509 = vmul.f32 %v467, %v500
    %v510 = vmul.f32 %v470, %v500
    %v511 = vmul.f32 %v475, %v500
    %v512 = vmul.f32 %v478, %v500
    %v513 = vmul.f32 %v483, %v500
    %v514 = vmul.f32 %v486, %v500
    %v515 = vmul.f32 %v491, %v500
    %v516 = vmul.f32 %v494, %v500
    %v517 = vlaneseq
    %v518 = vshrl.u32 %v517, 7
    %v519 = vsub.s32 1, %v518
    %v520 = vrot.slane %v116, %v519
    %v521 = vadd.f32 %v501, %v520
    %v522 = vadd.f32 %v502, %v520
    %v523 = vadd.f32 %v503, %v520
    %v524 = vadd.f32 %v504, %v520
    %v525 = vadd.f32 %v505, %v520
    %v526 = vadd.f32 %v506, %v520
    %v527 = vadd.f32 %v507, %v520
    %v528 = vadd.f32 %v508, %v520
    %v529 = vadd.f32 %v509, %v520
    %v530 = vadd.f32 %v510, %v520
    %v531 = vadd.f32 %v511, %v520
    %v532 = vadd.f32 %v512, %v520
    %v533 = vadd.f32 %v513, %v520
    %v534 = vadd.f32 %v514, %v520
    %v535 = vadd.f32 %v515, %v520
    %v536 = vadd.f32 %v516, %v520
    %v537 = vmax.f32 %v521, 0.0
    %v538 = vmax.f32 %v522, 0.0
    %v539 = vmax.f32 %v523, 0.0
    %v540 = vmax.f32 %v524, 0.0
    %v541 = vmax.f32 %v525, 0.0
    %v542 = vmax.f32 %v526, 0.0
    %v543 = vmax.f32 %v527, 0.0
    %v544 = vmax.f32 %v528, 0.0
    %v545 = vmax.f32 %v529, 0.0
    %v546 = vmax.f32 %v530, 0.0
    %v547 = vmax.f32 %v531, 0.0
    %v548 = vmax.f32 %v532, 0.0
    %v549 = vmax.f32 %v533, 0.0
    %v550 = vmax.f32 %v534, 0.0
    %v551 = vmax.f32 %v535, 0.0
    %v552 = vmax.f32 %v536, 0.0
    %v553 = vpack.c.bf16 %v538, %v537
    %v554 = vpack.c.bf16 %v540, %v539
    %v555 = vpack.c.bf16 %v542, %v541
    %v556 = vpack.c.bf16 %v544, %v543
    %v557 = vpack.c.bf16 %v546, %v545
    %v558 = vpack.c.bf16 %v548, %v547
    %v559 = vpack.c.bf16 %v550, %v549
    %v560 = vpack.c.bf16 %v552, %v551
    %v561 = vld [vmem:[#allocation6] sm:$0xf]
    %v562 = vld [vmem:[#allocation6 + $0x4] sm:$0xf]
    %v563 = vld [vmem:[#allocation6 + $0x8] sm:$0xf]
    %v564 = vld [vmem:[#allocation6 + $0xc] sm:$0xf]
    %v565 = vld [vmem:[#allocation6 + $0x10] sm:$0xf]
    %v566 = vld [vmem:[#allocation6 + $0x14] sm:$0xf]
    %v567 = vld [vmem:[#allocation6 + $0x18] sm:$0xf]
    %v568 = vld [vmem:[#allocation6 + $0x1c] sm:$0xf]
    %v569 = vld [vmem:[#allocation6 + $0x20] sm:$0xf]
    %v570 = vld [vmem:[#allocation6 + $0x24] sm:$0xf]
    %v571 = vld [vmem:[#allocation6 + $0x28] sm:$0xf]
    %v572 = vld [vmem:[#allocation6 + $0x2c] sm:$0xf]
    %v573 = vld [vmem:[#allocation6 + $0x30] sm:$0xf]
    %v574 = vld [vmem:[#allocation6 + $0x34] sm:$0xf]
    %v575 = vld [vmem:[#allocation6 + $0x38] sm:$0xf]
    %v576 = vld [vmem:[#allocation6 + $0x3c] sm:$0xf]
    %v593 = vunpack.c.l.b16 %v561
    %v594 = vunpack.c.l.b16 %v562
    %v595 = vunpack.c.l.b16 %v563
    %v596 = vunpack.c.l.b16 %v564
    %v597 = vunpack.c.l.b16 %v565
    %v598 = vunpack.c.l.b16 %v566
    %v599 = vunpack.c.l.b16 %v567
    %v600 = vunpack.c.l.b16 %v568
    %v601 = vunpack.c.l.b16 %v569
    %v602 = vunpack.c.l.b16 %v570
    %v603 = vunpack.c.l.b16 %v571
    %v604 = vunpack.c.l.b16 %v572
    %v605 = vunpack.c.l.b16 %v573
    %v606 = vunpack.c.l.b16 %v574
    %v607 = vunpack.c.l.b16 %v575
    %v608 = vunpack.c.l.b16 %v576
    %v609 = vpack.c.b16 %v594, %v593
    %v610 = vpack.c.b16 %v596, %v595
    %v611 = vpack.c.b16 %v598, %v597
    %v612 = vpack.c.b16 %v600, %v599
    %v613 = vpack.c.b16 %v602, %v601
    %v614 = vpack.c.b16 %v604, %v603
    %v615 = vpack.c.b16 %v606, %v605
    %v616 = vpack.c.b16 %v608, %v607
    %625 = vmatprep.subr.bf16.mxu0 0
    %626 = vmatpush1.bf16.msra.mxu0 %v609
    %627 = vmatprep.subr.bf16.mxu0 0
    %628 = vmatpush1.bf16.msra.mxu0 %v610
    %629 = vmatprep.subr.bf16.mxu0 0
    %630 = vmatpush1.bf16.msra.mxu0 %v611
    %631 = vmatprep.subr.bf16.mxu0 0
    %632 = vmatpush1.bf16.msra.mxu0 %v612
    %633 = vmatprep.subr.bf16.mxu0 0
    %634 = vmatpush1.bf16.msra.mxu0 %v613
    %635 = vmatprep.subr.bf16.mxu0 0
    %636 = vmatpush1.bf16.msra.mxu0 %v614
    %637 = vmatprep.subr.bf16.mxu0 0
    %638 = vmatpush1.bf16.msra.mxu0 %v615
    %639 = vmatprep.subr.bf16.mxu0 0
    %640 = vmatpush1.bf16.msra.mxu0 %v616
    %641 = vmatprep.subr.bf16.mxu0 0
    %642 = vmatpush1.bf16.msra.mxu0 0
    %643 = vmatprep.subr.bf16.mxu0 0
    %644 = vmatpush1.bf16.msra.mxu0 0
    %645 = vmatprep.subr.bf16.mxu0 0
    %646 = vmatpush1.bf16.msra.mxu0 0
    %647 = vmatprep.subr.bf16.mxu0 0
    %648 = vmatpush1.bf16.msra.mxu0 0
    %649 = vmatprep.subr.bf16.mxu0 0
    %650 = vmatpush1.bf16.msra.mxu0 0
    %651 = vmatprep.subr.bf16.mxu0 0
    %652 = vmatpush1.bf16.msra.mxu0 0
    %653 = vmatprep.subr.bf16.mxu0 0
    %654 = vmatpush1.bf16.msra.mxu0 0
    %655 = vmatprep.subr.bf16.mxu0 0
    %656 = vmatpush1.bf16.msra.mxu0 0
    %657 = vmatprep.mubr.bf16.mxu0 0
    %658 = vmatmul.mubr.bf16.gmra.mrb[0].mxu0 %v553
    %v659 = vpop.f32.mrb[0].mxu0
    %v660 = vadd.f32 0.0, %v659
    %v661 = vpop.f32.mrb[0].mxu0
    %v662 = vpop.f32.mrb[0].mxu0
    %v663 = vadd.f32 0.0, %v662
    %v664 = vpop.f32.mrb[0].mxu0
    %665 = vmatprep.mubr.bf16.mxu0 0
    %666 = vmatmul.mubr.bf16.gmra.mrb[0].mxu0 %v554
    %v667 = vpop.f32.mrb[0].mxu0
    %v668 = vadd.f32 0.0, %v667
    %v669 = vpop.f32.mrb[0].mxu0
    %v670 = vpop.f32.mrb[0].mxu0
    %v671 = vadd.f32 0.0, %v670
    %v672 = vpop.f32.mrb[0].mxu0
    %673 = vmatprep.mubr.bf16.mxu0 0
    %674 = vmatmul.mubr.bf16.gmra.mrb[0].mxu0 %v555
    %v675 = vpop.f32.mrb[0].mxu0
    %v676 = vadd.f32 0.0, %v675
    %v677 = vpop.f32.mrb[0].mxu0
    %v678 = vpop.f32.mrb[0].mxu0
    %v679 = vadd.f32 0.0, %v678
    %v680 = vpop.f32.mrb[0].mxu0
    %681 = vmatprep.mubr.bf16.mxu0 0
    %682 = vmatmul.mubr.bf16.gmra.mrb[0].mxu0 %v556
    %v683 = vpop.f32.mrb[0].mxu0
    %v684 = vadd.f32 0.0, %v683
    %v685 = vpop.f32.mrb[0].mxu0
    %v686 = vpop.f32.mrb[0].mxu0
    %v687 = vadd.f32 0.0, %v686
    %v688 = vpop.f32.mrb[0].mxu0
    %689 = vmatprep.mubr.bf16.mxu0 0
    %690 = vmatmul.mubr.bf16.gmra.mrb[0].mxu0 %v557
    %v691 = vpop.f32.mrb[0].mxu0
    %v692 = vadd.f32 0.0, %v691
    %v693 = vpop.f32.mrb[0].mxu0
    %v694 = vpop.f32.mrb[0].mxu0
    %v695 = vadd.f32 0.0, %v694
    %v696 = vpop.f32.mrb[0].mxu0
    %697 = vmatprep.mubr.bf16.mxu0 0
    %698 = vmatmul.mubr.bf16.gmra.mrb[0].mxu0 %v558
    %v699 = vpop.f32.mrb[0].mxu0
    %v700 = vadd.f32 0.0, %v699
    %v701 = vpop.f32.mrb[0].mxu0
    %v702 = vpop.f32.mrb[0].mxu0
    %v703 = vadd.f32 0.0, %v702
    %v704 = vpop.f32.mrb[0].mxu0
    %705 = vmatprep.mubr.bf16.mxu0 0
    %706 = vmatmul.mubr.bf16.gmra.mrb[0].mxu0 %v559
    %v707 = vpop.f32.mrb[0].mxu0
    %v708 = vadd.f32 0.0, %v707
    %v709 = vpop.f32.mrb[0].mxu0
    %v710 = vpop.f32.mrb[0].mxu0
    %v711 = vadd.f32 0.0, %v710
    %v712 = vpop.f32.mrb[0].mxu0
    %713 = vmatprep.mubr.bf16.mxu0 0
    %714 = vmatmul.mubr.bf16.gmra.mrb[0].mxu0 %v560
    %v715 = vpop.f32.mrb[0].mxu0
    %v716 = vadd.f32 0.0, %v715
    %v717 = vpop.f32.mrb[0].mxu0
    %v718 = vpop.f32.mrb[0].mxu0
    %v719 = vadd.f32 0.0, %v718
    %v720 = vpop.f32.mrb[0].mxu0
    %721 = vdwg.mxu0
    %v722 = vpack.c.bf16 %v663, %v660
    %v723 = vpack.c.bf16 %v671, %v668
    %v724 = vpack.c.bf16 %v679, %v676
    %v725 = vpack.c.bf16 %v687, %v684
    %v726 = vpack.c.bf16 %v695, %v692
    %v727 = vpack.c.bf16 %v703, %v700
    %v728 = vpack.c.bf16 %v711, %v708
    %v729 = vpack.c.bf16 %v719, %v716
    %730 = vmatprep.subr.bf16.mxu0 0
    %731 = vmatpush1.bf16.msra.mxu0 %v722
    %732 = vmatprep.subr.bf16.mxu0 0
    %733 = vmatpush1.bf16.msra.mxu0 %v723
    %734 = vmatprep.subr.bf16.mxu0 0
    %735 = vmatpush1.bf16.msra.mxu0 %v724
    %736 = vmatprep.subr.bf16.mxu0 0
    %737 = vmatpush1.bf16.msra.mxu0 %v725
    %738 = vmatprep.subr.bf16.mxu0 0
    %739 = vmatpush1.bf16.msra.mxu0 %v726
    %740 = vmatprep.subr.bf16.mxu0 0
    %741 = vmatpush1.bf16.msra.mxu0 %v727
    %742 = vmatprep.subr.bf16.mxu0 0
    %743 = vmatpush1.bf16.msra.mxu0 %v728
    %744 = vmatprep.subr.bf16.mxu0 0
    %745 = vmatpush1.bf16.msra.mxu0 %v729
    %746 = vmatprep.subr.bf16.mxu0 0
    %747 = vmatpush1.bf16.msra.mxu0 0
    %748 = vmatprep.subr.bf16.mxu0 0
    %749 = vmatpush1.bf16.msra.mxu0 0
    %750 = vmatprep.subr.bf16.mxu0 0
    %751 = vmatpush1.bf16.msra.mxu0 0
    %752 = vmatprep.subr.bf16.mxu0 0
    %753 = vmatpush1.bf16.msra.mxu0 0
    %754 = vmatprep.subr.bf16.mxu0 0
    %755 = vmatpush1.bf16.msra.mxu0 0
    %756 = vmatprep.subr.bf16.mxu0 0
    %757 = vmatpush1.bf16.msra.mxu0 0
    %758 = vmatprep.subr.bf16.mxu0 0
    %759 = vmatpush1.bf16.msra.mxu0 0
    %760 = vmatprep.subr.bf16.mxu0 0
    %761 = vmatpush1.bf16.msra.mxu0 0
    %762 = vmatprep.mubr.bf16.mxu0 0
    %763 = vmatmul.mubr.bf16.gmra.mrb[0].mxu0 %v384
    %v764 = vpop.f32.mrb[0].mxu0
    %v765 = vadd.f32 0.0, %v764
    %v766 = vpop.f32.mrb[0].mxu0
    %v767 = vpop.f32.mrb[0].mxu0
    %v768 = vadd.f32 0.0, %v767
    %v769 = vpop.f32.mrb[0].mxu0
    %770 = vmatprep.mubr.bf16.mxu0 0
    %771 = vmatmul.mubr.bf16.gmra.mrb[0].mxu0 %v385
    %v772 = vpop.f32.mrb[0].mxu0
    %v773 = vadd.f32 0.0, %v772
    %v774 = vpop.f32.mrb[0].mxu0
    %v775 = vpop.f32.mrb[0].mxu0
    %v776 = vadd.f32 0.0, %v775
    %v777 = vpop.f32.mrb[0].mxu0
    %778 = vmatprep.mubr.bf16.mxu0 0
    %779 = vmatmul.mubr.bf16.gmra.mrb[0].mxu0 %v386
    %v780 = vpop.f32.mrb[0].mxu0
    %v781 = vadd.f32 0.0, %v780
    %v782 = vpop.f32.mrb[0].mxu0
    %v783 = vpop.f32.mrb[0].mxu0
    %v784 = vadd.f32 0.0, %v783
    %v785 = vpop.f32.mrb[0].mxu0
    %786 = vmatprep.mubr.bf16.mxu0 0
    %787 = vmatmul.mubr.bf16.gmra.mrb[0].mxu0 %v387
    %v788 = vpop.f32.mrb[0].mxu0
    %v789 = vadd.f32 0.0, %v788
    %v790 = vpop.f32.mrb[0].mxu0
    %v791 = vpop.f32.mrb[0].mxu0
    %v792 = vadd.f32 0.0, %v791
    %v793 = vpop.f32.mrb[0].mxu0
    %794 = vmatprep.mubr.bf16.mxu0 0
    %795 = vmatmul.mubr.bf16.gmra.mrb[0].mxu0 %v388
    %v796 = vpop.f32.mrb[0].mxu0
    %v797 = vadd.f32 0.0, %v796
    %v798 = vpop.f32.mrb[0].mxu0
    %v799 = vpop.f32.mrb[0].mxu0
    %v800 = vadd.f32 0.0, %v799
    %v801 = vpop.f32.mrb[0].mxu0
    %802 = vmatprep.mubr.bf16.mxu0 0
    %803 = vmatmul.mubr.bf16.gmra.mrb[0].mxu0 %v389
    %v804 = vpop.f32.mrb[0].mxu0
    %v805 = vadd.f32 0.0, %v804
    %v806 = vpop.f32.mrb[0].mxu0
    %v807 = vpop.f32.mrb[0].mxu0
    %v808 = vadd.f32 0.0, %v807
    %v809 = vpop.f32.mrb[0].mxu0
    %810 = vmatprep.mubr.bf16.mxu0 0
    %811 = vmatmul.mubr.bf16.gmra.mrb[0].mxu0 %v390
    %v812 = vpop.f32.mrb[0].mxu0
    %v813 = vadd.f32 0.0, %v812
    %v814 = vpop.f32.mrb[0].mxu0
    %v815 = vpop.f32.mrb[0].mxu0
    %v816 = vadd.f32 0.0, %v815
    %v817 = vpop.f32.mrb[0].mxu0
    %818 = vmatprep.mubr.bf16.mxu0 0
    %819 = vmatmul.mubr.bf16.gmra.mrb[0].mxu0 %v391
    %v820 = vpop.f32.mrb[0].mxu0
    %v821 = vadd.f32 0.0, %v820
    %v822 = vpop.f32.mrb[0].mxu0
    %v823 = vpop.f32.mrb[0].mxu0
    %v824 = vadd.f32 0.0, %v823
    %v825 = vpop.f32.mrb[0].mxu0
    %826 = vdwg.mxu0
    %v827 = vlaneseq
    %v828 = vshrl.u32 %v827, 7
    %v829 = vsub.s32 0, %v828
    %v830 = vrot.slane %v117, %v829
    %v831 = vmul.f32 %v765, %v830
    %v832 = vmul.f32 %v768, %v830
    %v833 = vmul.f32 %v773, %v830
    %v834 = vmul.f32 %v776, %v830
    %v835 = vmul.f32 %v781, %v830
    %v836 = vmul.f32 %v784, %v830
    %v837 = vmul.f32 %v789, %v830
    %v838 = vmul.f32 %v792, %v830
    %v839 = vmul.f32 %v797, %v830
    %v840 = vmul.f32 %v800, %v830
    %v841 = vmul.f32 %v805, %v830
    %v842 = vmul.f32 %v808, %v830
    %v843 = vmul.f32 %v813, %v830
    %v844 = vmul.f32 %v816, %v830
    %v845 = vmul.f32 %v821, %v830
    %v846 = vmul.f32 %v824, %v830
    %v847 = vlaneseq
    %v848 = vshrl.u32 %v847, 7
    %v849 = vsub.s32 1, %v848
    %v850 = vrot.slane %v117, %v849
    %v851 = vadd.f32 %v831, %v850
    %v852 = vadd.f32 %v832, %v850
    %v853 = vadd.f32 %v833, %v850
    %v854 = vadd.f32 %v834, %v850
    %v855 = vadd.f32 %v835, %v850
    %v856 = vadd.f32 %v836, %v850
    %v857 = vadd.f32 %v837, %v850
    %v858 = vadd.f32 %v838, %v850
    %v859 = vadd.f32 %v839, %v850
    %v860 = vadd.f32 %v840, %v850
    %v861 = vadd.f32 %v841, %v850
    %v862 = vadd.f32 %v842, %v850
    %v863 = vadd.f32 %v843, %v850
    %v864 = vadd.f32 %v844, %v850
    %v865 = vadd.f32 %v845, %v850
    %v866 = vadd.f32 %v846, %v850
    %v867 = vmax.f32 %v851, 0.0
    %v868 = vmax.f32 %v852, 0.0
    %v869 = vmax.f32 %v853, 0.0
    %v870 = vmax.f32 %v854, 0.0
    %v871 = vmax.f32 %v855, 0.0
    %v872 = vmax.f32 %v856, 0.0
    %v873 = vmax.f32 %v857, 0.0
    %v874 = vmax.f32 %v858, 0.0
    %v875 = vmax.f32 %v859, 0.0
    %v876 = vmax.f32 %v860, 0.0
    %v877 = vmax.f32 %v861, 0.0
    %v878 = vmax.f32 %v862, 0.0
    %v879 = vmax.f32 %v863, 0.0
    %v880 = vmax.f32 %v864, 0.0
    %v881 = vmax.f32 %v865, 0.0
    %v882 = vmax.f32 %v866, 0.0
    %v883 = vpack.c.bf16 %v868, %v867
    %v884 = vpack.c.bf16 %v870, %v869
    %v885 = vpack.c.bf16 %v872, %v871
    %v886 = vpack.c.bf16 %v874, %v873
    %v887 = vpack.c.bf16 %v876, %v875
    %v888 = vpack.c.bf16 %v878, %v877
    %v889 = vpack.c.bf16 %v880, %v879
    %v890 = vpack.c.bf16 %v882, %v881
    %v891 = vld [vmem:[%s4] sm:$0xf]
    %v892 = vld [vmem:[%s4 + $0x4] sm:$0xf]
    %v893 = vld [vmem:[%s4 + $0x8] sm:$0xf]
    %v894 = vld [vmem:[%s4 + $0xc] sm:$0xf]
    %v895 = vld [vmem:[%s4 + $0x10] sm:$0xf]
    %v896 = vld [vmem:[%s4 + $0x14] sm:$0xf]
    %v897 = vld [vmem:[%s4 + $0x18] sm:$0xf]
    %v898 = vld [vmem:[%s4 + $0x1c] sm:$0xf]
    %v899 = vld [vmem:[%s4 + $0x20] sm:$0xf]
    %v900 = vld [vmem:[%s4 + $0x24] sm:$0xf]
    %v901 = vld [vmem:[%s4 + $0x28] sm:$0xf]
    %v902 = vld [vmem:[%s4 + $0x2c] sm:$0xf]
    %v903 = vld [vmem:[%s4 + $0x30] sm:$0xf]
    %v904 = vld [vmem:[%s4 + $0x34] sm:$0xf]
    %v905 = vld [vmem:[%s4 + $0x38] sm:$0xf]
    %v906 = vld [vmem:[%s4 + $0x3c] sm:$0xf]
    %v923 = vunpack.c.l.b16 %v891
    %v924 = vunpack.c.l.b16 %v892
    %v925 = vunpack.c.l.b16 %v893
    %v926 = vunpack.c.l.b16 %v894
    %v927 = vunpack.c.l.b16 %v895
    %v928 = vunpack.c.l.b16 %v896
    %v929 = vunpack.c.l.b16 %v897
    %v930 = vunpack.c.l.b16 %v898
    %v931 = vunpack.c.l.b16 %v899
    %v932 = vunpack.c.l.b16 %v900
    %v933 = vunpack.c.l.b16 %v901
    %v934 = vunpack.c.l.b16 %v902
    %v935 = vunpack.c.l.b16 %v903
    %v936 = vunpack.c.l.b16 %v904
    %v937 = vunpack.c.l.b16 %v905
    %v938 = vunpack.c.l.b16 %v906
    %v939 = vpack.c.b16 %v924, %v923
    %v940 = vpack.c.b16 %v926, %v925
    %v941 = vpack.c.b16 %v928, %v927
    %v942 = vpack.c.b16 %v930, %v929
    %v943 = vpack.c.b16 %v932, %v931
    %v944 = vpack.c.b16 %v934, %v933
    %v945 = vpack.c.b16 %v936, %v935
    %v946 = vpack.c.b16 %v938, %v937
    %955 = vmatprep.subr.bf16.mxu0 0
    %956 = vmatpush1.bf16.msra.mxu0 %v939
    %957 = vmatprep.subr.bf16.mxu0 0
    %958 = vmatpush1.bf16.msra.mxu0 %v940
    %959 = vmatprep.subr.bf16.mxu0 0
    %960 = vmatpush1.bf16.msra.mxu0 %v941
    %961 = vmatprep.subr.bf16.mxu0 0
    %962 = vmatpush1.bf16.msra.mxu0 %v942
    %963 = vmatprep.subr.bf16.mxu0 0
    %964 = vmatpush1.bf16.msra.mxu0 %v943
    %965 = vmatprep.subr.bf16.mxu0 0
    %966 = vmatpush1.bf16.msra.mxu0 %v944
    %967 = vmatprep.subr.bf16.mxu0 0
    %968 = vmatpush1.bf16.msra.mxu0 %v945
    %969 = vmatprep.subr.bf16.mxu0 0
    %970 = vmatpush1.bf16.msra.mxu0 %v946
    %971 = vmatprep.subr.bf16.mxu0 0
    %972 = vmatpush1.bf16.msra.mxu0 0
    %973 = vmatprep.subr.bf16.mxu0 0
    %974 = vmatpush1.bf16.msra.mxu0 0
    %975 = vmatprep.subr.bf16.mxu0 0
    %976 = vmatpush1.bf16.msra.mxu0 0
    %977 = vmatprep.subr.bf16.mxu0 0
    %978 = vmatpush1.bf16.msra.mxu0 0
    %979 = vmatprep.subr.bf16.mxu0 0
    %980 = vmatpush1.bf16.msra.mxu0 0
    %981 = vmatprep.subr.bf16.mxu0 0
    %982 = vmatpush1.bf16.msra.mxu0 0
    %983 = vmatprep.subr.bf16.mxu0 0
    %984 = vmatpush1.bf16.msra.mxu0 0
    %985 = vmatprep.subr.bf16.mxu0 0
    %986 = vmatpush1.bf16.msra.mxu0 0
    %987 = vmatprep.mubr.bf16.mxu0 0
    %988 = vmatmul.mubr.bf16.gmra.mrb[0].mxu0 %v883
    %v989 = vpop.f32.mrb[0].mxu0
    %v990 = vadd.f32 0.0, %v989
    %v991 = vpop.f32.mrb[0].mxu0
    %v992 = vpop.f32.mrb[0].mxu0
    %v993 = vadd.f32 0.0, %v992
    %v994 = vpop.f32.mrb[0].mxu0
    %995 = vmatprep.mubr.bf16.mxu0 0
    %996 = vmatmul.mubr.bf16.gmra.mrb[0].mxu0 %v884
    %v997 = vpop.f32.mrb[0].mxu0
    %v998 = vadd.f32 0.0, %v997
    %v999 = vpop.f32.mrb[0].mxu0
    %v1000 = vpop.f32.mrb[0].mxu0
    %v1001 = vadd.f32 0.0, %v1000
    %v1002 = vpop.f32.mrb[0].mxu0
    %1003 = vmatprep.mubr.bf16.mxu0 0
    %1004 = vmatmul.mubr.bf16.gmra.mrb[0].mxu0 %v885
    %v1005 = vpop.f32.mrb[0].mxu0
    %v1006 = vadd.f32 0.0, %v1005
    %v1007 = vpop.f32.mrb[0].mxu0
    %v1008 = vpop.f32.mrb[0].mxu0
    %v1009 = vadd.f32 0.0, %v1008
    %v1010 = vpop.f32.mrb[0].mxu0
    %1011 = vmatprep.mubr.bf16.mxu0 0
    %1012 = vmatmul.mubr.bf16.gmra.mrb[0].mxu0 %v886
    %v1013 = vpop.f32.mrb[0].mxu0
    %v1014 = vadd.f32 0.0, %v1013
    %v1015 = vpop.f32.mrb[0].mxu0
    %v1016 = vpop.f32.mrb[0].mxu0
    %v1017 = vadd.f32 0.0, %v1016
    %v1018 = vpop.f32.mrb[0].mxu0
    %1019 = vmatprep.mubr.bf16.mxu0 0
    %1020 = vmatmul.mubr.bf16.gmra.mrb[0].mxu0 %v887
    %v1021 = vpop.f32.mrb[0].mxu0
    %v1022 = vadd.f32 0.0, %v1021
    %v1023 = vpop.f32.mrb[0].mxu0
    %v1024 = vpop.f32.mrb[0].mxu0
    %v1025 = vadd.f32 0.0, %v1024
    %v1026 = vpop.f32.mrb[0].mxu0
    %1027 = vmatprep.mubr.bf16.mxu0 0
    %1028 = vmatmul.mubr.bf16.gmra.mrb[0].mxu0 %v888
    %v1029 = vpop.f32.mrb[0].mxu0
    %v1030 = vadd.f32 0.0, %v1029
    %v1031 = vpop.f32.mrb[0].mxu0
    %v1032 = vpop.f32.mrb[0].mxu0
    %v1033 = vadd.f32 0.0, %v1032
    %v1034 = vpop.f32.mrb[0].mxu0
    %1035 = vmatprep.mubr.bf16.mxu0 0
    %1036 = vmatmul.mubr.bf16.gmra.mrb[0].mxu0 %v889
    %v1037 = vpop.f32.mrb[0].mxu0
    %v1038 = vadd.f32 0.0, %v1037
    %v1039 = vpop.f32.mrb[0].mxu0
    %v1040 = vpop.f32.mrb[0].mxu0
    %v1041 = vadd.f32 0.0, %v1040
    %v1042 = vpop.f32.mrb[0].mxu0
    %1043 = vmatprep.mubr.bf16.mxu0 0
    %1044 = vmatmul.mubr.bf16.gmra.mrb[0].mxu0 %v890
    %v1045 = vpop.f32.mrb[0].mxu0
    %v1046 = vadd.f32 0.0, %v1045
    %v1047 = vpop.f32.mrb[0].mxu0
    %v1048 = vpop.f32.mrb[0].mxu0
    %v1049 = vadd.f32 0.0, %v1048
    %v1050 = vpop.f32.mrb[0].mxu0
    %1051 = vdwg.mxu0
    %v1052 = vpack.c.bf16 %v993, %v990
    %v1053 = vpack.c.bf16 %v1001, %v998
    %v1054 = vpack.c.bf16 %v1009, %v1006
    %v1055 = vpack.c.bf16 %v1017, %v1014
    %v1056 = vpack.c.bf16 %v1025, %v1022
    %v1057 = vpack.c.bf16 %v1033, %v1030
    %v1058 = vpack.c.bf16 %v1041, %v1038
    %v1059 = vpack.c.bf16 %v1049, %v1046
    %1060 = vmatprep.subr.bf16.mxu0 0
    %1061 = vmatpush1.bf16.msra.mxu0 %v1052
    %1062 = vmatprep.subr.bf16.mxu0 0
    %1063 = vmatpush1.bf16.msra.mxu0 %v1053
    %1064 = vmatprep.subr.bf16.mxu0 0
    %1065 = vmatpush1.bf16.msra.mxu0 %v1054
    %1066 = vmatprep.subr.bf16.mxu0 0
    %1067 = vmatpush1.bf16.msra.mxu0 %v1055
    %1068 = vmatprep.subr.bf16.mxu0 0
    %1069 = vmatpush1.bf16.msra.mxu0 %v1056
    %1070 = vmatprep.subr.bf16.mxu0 0
    %1071 = vmatpush1.bf16.msra.mxu0 %v1057
    %1072 = vmatprep.subr.bf16.mxu0 0
    %1073 = vmatpush1.bf16.msra.mxu0 %v1058
    %1074 = vmatprep.subr.bf16.mxu0 0
    %1075 = vmatpush1.bf16.msra.mxu0 %v1059
    %1076 = vmatprep.subr.bf16.mxu0 0
    %1077 = vmatpush1.bf16.msra.mxu0 0
    %1078 = vmatprep.subr.bf16.mxu0 0
    %1079 = vmatpush1.bf16.msra.mxu0 0
    %1080 = vmatprep.subr.bf16.mxu0 0
    %1081 = vmatpush1.bf16.msra.mxu0 0
    %1082 = vmatprep.subr.bf16.mxu0 0
    %1083 = vmatpush1.bf16.msra.mxu0 0
    %1084 = vmatprep.subr.bf16.mxu0 0
    %1085 = vmatpush1.bf16.msra.mxu0 0
    %1086 = vmatprep.subr.bf16.mxu0 0
    %1087 = vmatpush1.bf16.msra.mxu0 0
    %1088 = vmatprep.subr.bf16.mxu0 0
    %1089 = vmatpush1.bf16.msra.mxu0 0
    %1090 = vmatprep.subr.bf16.mxu0 0
    %1091 = vmatpush1.bf16.msra.mxu0 0
    %1092 = vmatprep.mubr.bf16.mxu0 0
    %1093 = vmatmul.mubr.bf16.gmra.mrb[0].mxu0 %v384
    %v1094 = vpop.f32.mrb[0].mxu0
    %v1095 = vadd.f32 0.0, %v1094
    %v1096 = vpop.f32.mrb[0].mxu0
    %v1097 = vpop.f32.mrb[0].mxu0
    %v1098 = vadd.f32 0.0, %v1097
    %v1099 = vpop.f32.mrb[0].mxu0
    %1100 = vmatprep.mubr.bf16.mxu0 0
    %1101 = vmatmul.mubr.bf16.gmra.mrb[0].mxu0 %v385
    %v1102 = vpop.f32.mrb[0].mxu0
    %v1103 = vadd.f32 0.0, %v1102
    %v1104 = vpop.f32.mrb[0].mxu0
    %v1105 = vpop.f32.mrb[0].mxu0
    %v1106 = vadd.f32 0.0, %v1105
    %v1107 = vpop.f32.mrb[0].mxu0
    %1108 = vmatprep.mubr.bf16.mxu0 0
    %1109 = vmatmul.mubr.bf16.gmra.mrb[0].mxu0 %v386
    %v1110 = vpop.f32.mrb[0].mxu0
    %v1111 = vadd.f32 0.0, %v1110
    %v1112 = vpop.f32.mrb[0].mxu0
    %v1113 = vpop.f32.mrb[0].mxu0
    %v1114 = vadd.f32 0.0, %v1113
    %v1115 = vpop.f32.mrb[0].mxu0
    %1116 = vmatprep.mubr.bf16.mxu0 0
    %1117 = vmatmul.mubr.bf16.gmra.mrb[0].mxu0 %v387
    %v1118 = vpop.f32.mrb[0].mxu0
    %v1119 = vadd.f32 0.0, %v1118
    %v1120 = vpop.f32.mrb[0].mxu0
    %v1121 = vpop.f32.mrb[0].mxu0
    %v1122 = vadd.f32 0.0, %v1121
    %v1123 = vpop.f32.mrb[0].mxu0
    %1124 = vmatprep.mubr.bf16.mxu0 0
    %1125 = vmatmul.mubr.bf16.gmra.mrb[0].mxu0 %v388
    %v1126 = vpop.f32.mrb[0].mxu0
    %v1127 = vadd.f32 0.0, %v1126
    %v1128 = vpop.f32.mrb[0].mxu0
    %v1129 = vpop.f32.mrb[0].mxu0
    %v1130 = vadd.f32 0.0, %v1129
    %v1131 = vpop.f32.mrb[0].mxu0
    %1132 = vmatprep.mubr.bf16.mxu0 0
    %1133 = vmatmul.mubr.bf16.gmra.mrb[0].mxu0 %v389
    %v1134 = vpop.f32.mrb[0].mxu0
    %v1135 = vadd.f32 0.0, %v1134
    %v1136 = vpop.f32.mrb[0].mxu0
    %v1137 = vpop.f32.mrb[0].mxu0
    %v1138 = vadd.f32 0.0, %v1137
    %v1139 = vpop.f32.mrb[0].mxu0
    %1140 = vmatprep.mubr.bf16.mxu0 0
    %1141 = vmatmul.mubr.bf16.gmra.mrb[0].mxu0 %v390
    %v1142 = vpop.f32.mrb[0].mxu0
    %v1143 = vadd.f32 0.0, %v1142
    %v1144 = vpop.f32.mrb[0].mxu0
    %v1145 = vpop.f32.mrb[0].mxu0
    %v1146 = vadd.f32 0.0, %v1145
    %v1147 = vpop.f32.mrb[0].mxu0
    %1148 = vmatprep.mubr.bf16.mxu0 0
    %1149 = vmatmul.mubr.bf16.gmra.mrb[0].mxu0 %v391
    %v1150 = vpop.f32.mrb[0].mxu0
    %v1151 = vadd.f32 0.0, %v1150
    %v1152 = vpop.f32.mrb[0].mxu0
    %v1153 = vpop.f32.mrb[0].mxu0
    %v1154 = vadd.f32 0.0, %v1153
    %v1155 = vpop.f32.mrb[0].mxu0
    %1156 = vdwg.mxu0
    %v1157 = vlaneseq
    %v1158 = vshrl.u32 %v1157, 7
    %v1159 = vsub.s32 0, %v1158
    %v1160 = vrot.slane %v118, %v1159
    %v1161 = vmul.f32 %v1095, %v1160
    %v1162 = vmul.f32 %v1098, %v1160
    %v1163 = vmul.f32 %v1103, %v1160
    %v1164 = vmul.f32 %v1106, %v1160
    %v1165 = vmul.f32 %v1111, %v1160
    %v1166 = vmul.f32 %v1114, %v1160
    %v1167 = vmul.f32 %v1119, %v1160
    %v1168 = vmul.f32 %v1122, %v1160
    %v1169 = vmul.f32 %v1127, %v1160
    %v1170 = vmul.f32 %v1130, %v1160
    %v1171 = vmul.f32 %v1135, %v1160
    %v1172 = vmul.f32 %v1138, %v1160
    %v1173 = vmul.f32 %v1143, %v1160
    %v1174 = vmul.f32 %v1146, %v1160
    %v1175 = vmul.f32 %v1151, %v1160
    %v1176 = vmul.f32 %v1154, %v1160
    %v1177 = vlaneseq
    %v1178 = vshrl.u32 %v1177, 7
    %v1179 = vsub.s32 1, %v1178
    %v1180 = vrot.slane %v118, %v1179
    %v1181 = vadd.f32 %v1161, %v1180
    %v1182 = vadd.f32 %v1162, %v1180
    %v1183 = vadd.f32 %v1163, %v1180
    %v1184 = vadd.f32 %v1164, %v1180
    %v1185 = vadd.f32 %v1165, %v1180
    %v1186 = vadd.f32 %v1166, %v1180
    %v1187 = vadd.f32 %v1167, %v1180
    %v1188 = vadd.f32 %v1168, %v1180
    %v1189 = vadd.f32 %v1169, %v1180
    %v1190 = vadd.f32 %v1170, %v1180
    %v1191 = vadd.f32 %v1171, %v1180
    %v1192 = vadd.f32 %v1172, %v1180
    %v1193 = vadd.f32 %v1173, %v1180
    %v1194 = vadd.f32 %v1174, %v1180
    %v1195 = vadd.f32 %v1175, %v1180
    %v1196 = vadd.f32 %v1176, %v1180
    %v1197 = vmax.f32 %v1181, 0.0
    %v1198 = vmax.f32 %v1182, 0.0
    %v1199 = vmax.f32 %v1183, 0.0
    %v1200 = vmax.f32 %v1184, 0.0
    %v1201 = vmax.f32 %v1185, 0.0
    %v1202 = vmax.f32 %v1186, 0.0
    %v1203 = vmax.f32 %v1187, 0.0
    %v1204 = vmax.f32 %v1188, 0.0
    %v1205 = vmax.f32 %v1189, 0.0
    %v1206 = vmax.f32 %v1190, 0.0
    %v1207 = vmax.f32 %v1191, 0.0
    %v1208 = vmax.f32 %v1192, 0.0
    %v1209 = vmax.f32 %v1193, 0.0
    %v1210 = vmax.f32 %v1194, 0.0
    %v1211 = vmax.f32 %v1195, 0.0
    %v1212 = vmax.f32 %v1196, 0.0
    %v1213 = vunpack.c.l.bf16 %v553
    %v1214 = vunpack.c.h.bf16 %v553
    %v1215 = vunpack.c.l.bf16 %v554
    %v1216 = vunpack.c.h.bf16 %v554
    %v1217 = vunpack.c.l.bf16 %v555
    %v1218 = vunpack.c.h.bf16 %v555
    %v1219 = vunpack.c.l.bf16 %v556
    %v1220 = vunpack.c.h.bf16 %v556
    %v1221 = vunpack.c.l.bf16 %v557
    %v1222 = vunpack.c.h.bf16 %v557
    %v1223 = vunpack.c.l.bf16 %v558
    %v1224 = vunpack.c.h.bf16 %v558
    %v1225 = vunpack.c.l.bf16 %v559
    %v1226 = vunpack.c.h.bf16 %v559
    %v1227 = vunpack.c.l.bf16 %v560
    %v1228 = vunpack.c.h.bf16 %v560
    %v1229 = vadd.f32 %v1197, %v1213
    %v1230 = vadd.f32 %v1198, %v1214
    %v1231 = vadd.f32 %v1199, %v1215
    %v1232 = vadd.f32 %v1200, %v1216
    %v1233 = vadd.f32 %v1201, %v1217
    %v1234 = vadd.f32 %v1202, %v1218
    %v1235 = vadd.f32 %v1203, %v1219
    %v1236 = vadd.f32 %v1204, %v1220
    %v1237 = vadd.f32 %v1205, %v1221
    %v1238 = vadd.f32 %v1206, %v1222
    %v1239 = vadd.f32 %v1207, %v1223
    %v1240 = vadd.f32 %v1208, %v1224
    %v1241 = vadd.f32 %v1209, %v1225
    %v1242 = vadd.f32 %v1210, %v1226
    %v1243 = vadd.f32 %v1211, %v1227
    %v1244 = vadd.f32 %v1212, %v1228
    %v1245 = vpack.c.bf16 %v1230, %v1229
    %v1246 = vpack.c.bf16 %v1232, %v1231
    %v1247 = vpack.c.bf16 %v1234, %v1233
    %v1248 = vpack.c.bf16 %v1236, %v1235
    %v1249 = vpack.c.bf16 %v1238, %v1237
    %v1250 = vpack.c.bf16 %v1240, %v1239
    %v1251 = vpack.c.bf16 %v1242, %v1241
    %v1252 = vpack.c.bf16 %v1244, %v1243
    %v1253 = vld [vmem:[%s5] sm:$0xf]
    %v1254 = vld [vmem:[%s5 + $0x4] sm:$0xf]
    %v1255 = vld [vmem:[%s5 + $0x8] sm:$0xf]
    %v1256 = vld [vmem:[%s5 + $0xc] sm:$0xf]
    %v1257 = vld [vmem:[%s5 + $0x10] sm:$0xf]
    %v1258 = vld [vmem:[%s5 + $0x14] sm:$0xf]
    %v1259 = vld [vmem:[%s5 + $0x18] sm:$0xf]
    %v1260 = vld [vmem:[%s5 + $0x1c] sm:$0xf]
    %v1261 = vld [vmem:[%s5 + $0x20] sm:$0xf]
    %v1262 = vld [vmem:[%s5 + $0x24] sm:$0xf]
    %v1263 = vld [vmem:[%s5 + $0x28] sm:$0xf]
    %v1264 = vld [vmem:[%s5 + $0x2c] sm:$0xf]
    %v1265 = vld [vmem:[%s5 + $0x30] sm:$0xf]
    %v1266 = vld [vmem:[%s5 + $0x34] sm:$0xf]
    %v1267 = vld [vmem:[%s5 + $0x38] sm:$0xf]
    %v1268 = vld [vmem:[%s5 + $0x3c] sm:$0xf]
    %v1285 = vunpack.c.l.b16 %v1253
    %v1286 = vunpack.c.l.b16 %v1254
    %v1287 = vunpack.c.l.b16 %v1255
    %v1288 = vunpack.c.l.b16 %v1256
    %v1289 = vunpack.c.l.b16 %v1257
    %v1290 = vunpack.c.l.b16 %v1258
    %v1291 = vunpack.c.l.b16 %v1259
    %v1292 = vunpack.c.l.b16 %v1260
    %v1293 = vunpack.c.l.b16 %v1261
    %v1294 = vunpack.c.l.b16 %v1262
    %v1295 = vunpack.c.l.b16 %v1263
    %v1296 = vunpack.c.l.b16 %v1264
    %v1297 = vunpack.c.l.b16 %v1265
    %v1298 = vunpack.c.l.b16 %v1266
    %v1299 = vunpack.c.l.b16 %v1267
    %v1300 = vunpack.c.l.b16 %v1268
    %v1301 = vpack.c.b16 %v1286, %v1285
    %v1302 = vpack.c.b16 %v1288, %v1287
    %v1303 = vpack.c.b16 %v1290, %v1289
    %v1304 = vpack.c.b16 %v1292, %v1291
    %v1305 = vpack.c.b16 %v1294, %v1293
    %v1306 = vpack.c.b16 %v1296, %v1295
    %v1307 = vpack.c.b16 %v1298, %v1297
    %v1308 = vpack.c.b16 %v1300, %v1299
    %1317 = vmatprep.subr.bf16.mxu0 0
    %1318 = vmatpush1.bf16.msra.mxu0 %v1301
    %1319 = vmatprep.subr.bf16.mxu0 0
    %1320 = vmatpush1.bf16.msra.mxu0 %v1302
    %1321 = vmatprep.subr.bf16.mxu0 0
    %1322 = vmatpush1.bf16.msra.mxu0 %v1303
    %1323 = vmatprep.subr.bf16.mxu0 0
    %1324 = vmatpush1.bf16.msra.mxu0 %v1304
    %1325 = vmatprep.subr.bf16.mxu0 0
    %1326 = vmatpush1.bf16.msra.mxu0 %v1305
    %1327 = vmatprep.subr.bf16.mxu0 0
    %1328 = vmatpush1.bf16.msra.mxu0 %v1306
    %1329 = vmatprep.subr.bf16.mxu0 0
    %1330 = vmatpush1.bf16.msra.mxu0 %v1307
    %1331 = vmatprep.subr.bf16.mxu0 0
    %1332 = vmatpush1.bf16.msra.mxu0 %v1308
    %1333 = vmatprep.subr.bf16.mxu0 0
    %1334 = vmatpush1.bf16.msra.mxu0 0
    %1335 = vmatprep.subr.bf16.mxu0 0
    %1336 = vmatpush1.bf16.msra.mxu0 0
    %1337 = vmatprep.subr.bf16.mxu0 0
    %1338 = vmatpush1.bf16.msra.mxu0 0
    %1339 = vmatprep.subr.bf16.mxu0 0
    %1340 = vmatpush1.bf16.msra.mxu0 0
    %1341 = vmatprep.subr.bf16.mxu0 0
    %1342 = vmatpush1.bf16.msra.mxu0 0
    %1343 = vmatprep.subr.bf16.mxu0 0
    %1344 = vmatpush1.bf16.msra.mxu0 0
    %1345 = vmatprep.subr.bf16.mxu0 0
    %1346 = vmatpush1.bf16.msra.mxu0 0
    %1347 = vmatprep.subr.bf16.mxu0 0
    %1348 = vmatpush1.bf16.msra.mxu0 0
    %1349 = vmatprep.mubr.bf16.mxu0 0
    %1350 = vmatmul.mubr.bf16.gmra.mrb[0].mxu0 %v1245
    %v1351 = vpop.f32.mrb[0].mxu0
    %v1352 = vadd.f32 0.0, %v1351
    %v1353 = vpop.f32.mrb[0].mxu0
    %v1354 = vpop.f32.mrb[0].mxu0
    %v1355 = vadd.f32 0.0, %v1354
    %v1356 = vpop.f32.mrb[0].mxu0
    %1357 = vmatprep.mubr.bf16.mxu0 0
    %1358 = vmatmul.mubr.bf16.gmra.mrb[0].mxu0 %v1246
    %v1359 = vpop.f32.mrb[0].mxu0
    %v1360 = vadd.f32 0.0, %v1359
    %v1361 = vpop.f32.mrb[0].mxu0
    %v1362 = vpop.f32.mrb[0].mxu0
    %v1363 = vadd.f32 0.0, %v1362
    %v1364 = vpop.f32.mrb[0].mxu0
    %1365 = vmatprep.mubr.bf16.mxu0 0
    %1366 = vmatmul.mubr.bf16.gmra.mrb[0].mxu0 %v1247
    %v1367 = vpop.f32.mrb[0].mxu0
    %v1368 = vadd.f32 0.0, %v1367
    %v1369 = vpop.f32.mrb[0].mxu0
    %v1370 = vpop.f32.mrb[0].mxu0
    %v1371 = vadd.f32 0.0, %v1370
    %v1372 = vpop.f32.mrb[0].mxu0
    %1373 = vmatprep.mubr.bf16.mxu0 0
    %1374 = vmatmul.mubr.bf16.gmra.mrb[0].mxu0 %v1248
    %v1375 = vpop.f32.mrb[0].mxu0
    %v1376 = vadd.f32 0.0, %v1375
    %v1377 = vpop.f32.mrb[0].mxu0
    %v1378 = vpop.f32.mrb[0].mxu0
    %v1379 = vadd.f32 0.0, %v1378
    %v1380 = vpop.f32.mrb[0].mxu0
    %1381 = vmatprep.mubr.bf16.mxu0 0
    %1382 = vmatmul.mubr.bf16.gmra.mrb[0].mxu0 %v1249
    %v1383 = vpop.f32.mrb[0].mxu0
    %v1384 = vadd.f32 0.0, %v1383
    %v1385 = vpop.f32.mrb[0].mxu0
    %v1386 = vpop.f32.mrb[0].mxu0
    %v1387 = vadd.f32 0.0, %v1386
    %v1388 = vpop.f32.mrb[0].mxu0
    %1389 = vmatprep.mubr.bf16.mxu0 0
    %1390 = vmatmul.mubr.bf16.gmra.mrb[0].mxu0 %v1250
    %v1391 = vpop.f32.mrb[0].mxu0
    %v1392 = vadd.f32 0.0, %v1391
    %v1393 = vpop.f32.mrb[0].mxu0
    %v1394 = vpop.f32.mrb[0].mxu0
    %v1395 = vadd.f32 0.0, %v1394
    %v1396 = vpop.f32.mrb[0].mxu0
    %1397 = vmatprep.mubr.bf16.mxu0 0
    %1398 = vmatmul.mubr.bf16.gmra.mrb[0].mxu0 %v1251
    %v1399 = vpop.f32.mrb[0].mxu0
    %v1400 = vadd.f32 0.0, %v1399
    %v1401 = vpop.f32.mrb[0].mxu0
    %v1402 = vpop.f32.mrb[0].mxu0
    %v1403 = vadd.f32 0.0, %v1402
    %v1404 = vpop.f32.mrb[0].mxu0
    %1405 = vmatprep.mubr.bf16.mxu0 0
    %1406 = vmatmul.mubr.bf16.gmra.mrb[0].mxu0 %v1252
    %v1407 = vpop.f32.mrb[0].mxu0
    %v1408 = vadd.f32 0.0, %v1407
    %v1409 = vpop.f32.mrb[0].mxu0
    %v1410 = vpop.f32.mrb[0].mxu0
    %v1411 = vadd.f32 0.0, %v1410
    %v1412 = vpop.f32.mrb[0].mxu0
    %1413 = vdwg.mxu0
    %v1414 = vpack.c.bf16 %v1355, %v1352
    %v1415 = vpack.c.bf16 %v1363, %v1360
    %v1416 = vpack.c.bf16 %v1371, %v1368
    %v1417 = vpack.c.bf16 %v1379, %v1376
    %v1418 = vpack.c.bf16 %v1387, %v1384
    %v1419 = vpack.c.bf16 %v1395, %v1392
    %v1420 = vpack.c.bf16 %v1403, %v1400
    %v1421 = vpack.c.bf16 %v1411, %v1408
    %v1422 = vld [vmem:[%s9] sm:$0x1]
    %v1424 = vlaneseq
    %v1425 = vshrl.u32 %v1424, 7
    %v1426 = vsub.s32 0, %v1425
    %v1427 = vrot.slane %v1422, %v1426
    %1429 = vmatprep.subr.bf16.mxu0 0
    %1430 = vmatpush1.bf16.msra.mxu0 %v1414
    %1431 = vmatprep.subr.bf16.mxu0 0
    %1432 = vmatpush1.bf16.msra.mxu0 %v1415
    %1433 = vmatprep.subr.bf16.mxu0 0
    %1434 = vmatpush1.bf16.msra.mxu0 %v1416
    %1435 = vmatprep.subr.bf16.mxu0 0
    %1436 = vmatpush1.bf16.msra.mxu0 %v1417
    %1437 = vmatprep.subr.bf16.mxu0 0
    %1438 = vmatpush1.bf16.msra.mxu0 %v1418
    %1439 = vmatprep.subr.bf16.mxu0 0
    %1440 = vmatpush1.bf16.msra.mxu0 %v1419
    %1441 = vmatprep.subr.bf16.mxu0 0
    %1442 = vmatpush1.bf16.msra.mxu0 %v1420
    %1443 = vmatprep.subr.bf16.mxu0 0
    %1444 = vmatpush1.bf16.msra.mxu0 %v1421
    %1445 = vmatprep.subr.bf16.mxu0 0
    %1446 = vmatpush1.bf16.msra.mxu0 0
    %1447 = vmatprep.subr.bf16.mxu0 0
    %1448 = vmatpush1.bf16.msra.mxu0 0
    %1449 = vmatprep.subr.bf16.mxu0 0
    %1450 = vmatpush1.bf16.msra.mxu0 0
    %1451 = vmatprep.subr.bf16.mxu0 0
    %1452 = vmatpush1.bf16.msra.mxu0 0
    %1453 = vmatprep.subr.bf16.mxu0 0
    %1454 = vmatpush1.bf16.msra.mxu0 0
    %1455 = vmatprep.subr.bf16.mxu0 0
    %1456 = vmatpush1.bf16.msra.mxu0 0
    %1457 = vmatprep.subr.bf16.mxu0 0
    %1458 = vmatpush1.bf16.msra.mxu0 0
    %1459 = vmatprep.subr.bf16.mxu0 0
    %1460 = vmatpush1.bf16.msra.mxu0 0
    %1461 = vmatprep.mubr.bf16.mxu0 0
    %1462 = vmatmul.mubr.bf16.gmra.mrb[0].mxu0 %v384
    %v1463 = vpop.f32.mrb[0].mxu0
    %v1464 = vadd.f32 %v1427, %v1463
    %v1465 = vpop.f32.mrb[0].mxu0
    %v1466 = vpop.f32.mrb[0].mxu0
    %v1467 = vadd.f32 %v1427, %v1466
    %v1468 = vpop.f32.mrb[0].mxu0
    %1469 = vmatprep.mubr.bf16.mxu0 0
    %1470 = vmatmul.mubr.bf16.gmra.mrb[0].mxu0 %v385
    %v1471 = vpop.f32.mrb[0].mxu0
    %v1472 = vadd.f32 %v1427, %v1471
    %v1473 = vpop.f32.mrb[0].mxu0
    %v1474 = vpop.f32.mrb[0].mxu0
    %v1475 = vadd.f32 %v1427, %v1474
    %v1476 = vpop.f32.mrb[0].mxu0
    %1477 = vmatprep.mubr.bf16.mxu0 0
    %1478 = vmatmul.mubr.bf16.gmra.mrb[0].mxu0 %v386
    %v1479 = vpop.f32.mrb[0].mxu0
    %v1480 = vadd.f32 %v1427, %v1479
    %v1481 = vpop.f32.mrb[0].mxu0
    %v1482 = vpop.f32.mrb[0].mxu0
    %v1483 = vadd.f32 %v1427, %v1482
    %v1484 = vpop.f32.mrb[0].mxu0
    %1485 = vmatprep.mubr.bf16.mxu0 0
    %1486 = vmatmul.mubr.bf16.gmra.mrb[0].mxu0 %v387
    %v1487 = vpop.f32.mrb[0].mxu0
    %v1488 = vadd.f32 %v1427, %v1487
    %v1489 = vpop.f32.mrb[0].mxu0
    %v1490 = vpop.f32.mrb[0].mxu0
    %v1491 = vadd.f32 %v1427, %v1490
    %v1492 = vpop.f32.mrb[0].mxu0
    %1493 = vmatprep.mubr.bf16.mxu0 0
    %1494 = vmatmul.mubr.bf16.gmra.mrb[0].mxu0 %v388
    %v1495 = vpop.f32.mrb[0].mxu0
    %v1496 = vadd.f32 %v1427, %v1495
    %v1497 = vpop.f32.mrb[0].mxu0
    %v1498 = vpop.f32.mrb[0].mxu0
    %v1499 = vadd.f32 %v1427, %v1498
    %v1500 = vpop.f32.mrb[0].mxu0
    %1501 = vmatprep.mubr.bf16.mxu0 0
    %1502 = vmatmul.mubr.bf16.gmra.mrb[0].mxu0 %v389
    %v1503 = vpop.f32.mrb[0].mxu0
    %v1504 = vadd.f32 %v1427, %v1503
    %v1505 = vpop.f32.mrb[0].mxu0
    %v1506 = vpop.f32.mrb[0].mxu0
    %v1507 = vadd.f32 %v1427, %v1506
    %v1508 = vpop.f32.mrb[0].mxu0
    %1509 = vmatprep.mubr.bf16.mxu0 0
    %1510 = vmatmul.mubr.bf16.gmra.mrb[0].mxu0 %v390
    %v1511 = vpop.f32.mrb[0].mxu0
    %v1512 = vadd.f32 %v1427, %v1511
    %v1513 = vpop.f32.mrb[0].mxu0
    %v1514 = vpop.f32.mrb[0].mxu0
    %v1515 = vadd.f32 %v1427, %v1514
    %v1516 = vpop.f32.mrb[0].mxu0
    %1517 = vmatprep.mubr.bf16.mxu0 0
    %1518 = vmatmul.mubr.bf16.gmra.mrb[0].mxu0 %v391
    %v1519 = vpop.f32.mrb[0].mxu0
    %v1520 = vadd.f32 %v1427, %v1519
    %v1521 = vpop.f32.mrb[0].mxu0
    %v1522 = vpop.f32.mrb[0].mxu0
    %v1523 = vadd.f32 %v1427, %v1522
    %v1524 = vpop.f32.mrb[0].mxu0
    %1525 = vdwg.mxu0
    %1526 = vst [vmem:[%s10] sm:$0xff] %v1464
    %1527 = vst [vmem:[%s10 + $0x8] sm:$0xff] %v1467
    %1528 = vst [vmem:[%s10 + $0x10] sm:$0xff] %v1472
    %1529 = vst [vmem:[%s10 + $0x18] sm:$0xff] %v1475
    %1530 = vst [vmem:[%s10 + $0x20] sm:$0xff] %v1480
    %1531 = vst [vmem:[%s10 + $0x28] sm:$0xff] %v1483
    %1532 = vst [vmem:[%s10 + $0x30] sm:$0xff] %v1488
    %1533 = vst [vmem:[%s10 + $0x38] sm:$0xff] %v1491
    %1534 = vst [vmem:[%s10 + $0x40] sm:$0xff] %v1496
    %1535 = vst [vmem:[%s10 + $0x48] sm:$0xff] %v1499
    %1536 = vst [vmem:[%s10 + $0x50] sm:$0xff] %v1504
    %1537 = vst [vmem:[%s10 + $0x58] sm:$0xff] %v1507
    %1538 = vst [vmem:[%s10 + $0x60] sm:$0xff] %v1512
    %1539 = vst [vmem:[%s10 + $0x68] sm:$0xff] %v1515
    %1540 = vst [vmem:[%s10 + $0x70] sm:$0xff] %v1520
    %1541 = vst [vmem:[%s10 + $0x78] sm:$0xff] %v1523
    // Predicated region
    $region62: #{forward.1} parent=1 // pred_check
      _
    $region63: #{forward.1} parent=1 // pred_check_branch
      %1543 = sbr.rel (0) target = $region65
    $region64: #{forward.1} parent=1 // pred_region
      _
    $region65: #{forward.1} parent=1 // pred_fallthru
      _
    // Predicated region
    $region66: #{forward.1} parent=1 // pred_check
      _
    $region67: #{forward.1} parent=1 // pred_check_branch
      %1545 = sbr.rel (0) target = $region69
    $region68: #{forward.1} parent=1 // pred_region
      _
    $region69: #{forward.1} parent=1 // pred_fallthru
      _
    %1546 = vsyncpa [#allocation3], 1
    %1547 = vsyncpa [#allocation5], 1
    %1548 = vsyncpa [#allocation8], 1

</llo_original>
